<compile_context>
chip_gen: v7x
topology: tpu7x:2x2x1
jax: 0.10.0
libtpu: 0.0.40
codegen_flags: <defaults>
</compile_context>

<pallas_src>
import functools

import jax
import jax.numpy as jnp
import numpy as np
from jax.experimental import pallas as pl
from jax.experimental.pallas import tpu as pltpu


def transformer_block_kernel(x_ref, win_ref, bin_ref, wout_ref, bout_ref,
                             w1_ref, b1_ref, w2_ref, b2_ref,
                             out_ref, attw_ref, ctx_ref,
                             *, n_heads, compute_dtype):
    Bt, T, D = x_ref.shape
    hd = D // n_heads
    cdt = compute_dtype

    x_in = x_ref[...]                                     # (Bt, T, D), stored dtype
    x_mm = x_in.reshape(Bt * T, D).astype(cdt)            # matmul operand (no f32 round-trip)
    x_res = x_in.reshape(Bt * T, D).astype(jnp.float32)   # residual / LayerNorm path (f32)

    # ---- QKV projection. Weights pre-transposed on host (D, 3D); the 1/sqrt(hd) scale is
    # already folded into the Q columns of win/bin, so no in-kernel scale multiply. ----
    qkv = jnp.dot(x_mm, win_ref[...],
                  preferred_element_type=jnp.float32) + bin_ref[...]    # (Bt*T, 3D) f32

    q = qkv[:, :D].reshape(Bt, T, D).astype(cdt)
    k = qkv[:, D:2 * D].reshape(Bt, T, D).astype(cdt)
    v = qkv[:, 2 * D:].reshape(Bt, T, D).astype(cdt)

    # ---- multi-head self attention: static per-head loop (robust lowering), batched 3-D
    # einsums over the Bt batches, per-head slab stores (no jnp.stack / jnp.concatenate). ----
    for h in range(n_heads):                               # static, small n_heads
        sl = slice(h * hd, (h + 1) * hd)
        s = jnp.einsum('bqd,bkd->bqk', q[:, :, sl], k[:, :, sl],
                       preferred_element_type=jnp.float32)              # (Bt, T, T) f32
        s = s - jnp.max(s, axis=-1, keepdims=True)
        e = jnp.exp(s)
        # approximate EUP reciprocal: rows sum to ~1 (inference-grade softmax)
        p = e * pl.reciprocal(jnp.sum(e, axis=-1, keepdims=True), approx=True)

        # per-head attention-weight store (bounds live ranges; overlaps next head's MXU work)
        attw_ref[:, h:h + 1, :, :] = p.reshape(Bt, 1, T, T).astype(attw_ref.dtype)

        ctx_h = jnp.einsum('bqk,bkd->bqd', p.astype(cdt), v[:, :, sl],
                           preferred_element_type=jnp.float32)           # (Bt, T, hd)
        # write context into the VMEM slab at lane offset h*hd (replaces concatenate)
        ctx_ref[:, h * hd:(h + 1) * hd] = ctx_h.reshape(Bt * T, hd).astype(ctx_ref.dtype)

    # one big out-projection matmul on the assembled (Bt*T, D) context slab
    att_out = jnp.dot(ctx_ref[...], wout_ref[...],
                      preferred_element_type=jnp.float32) + bout_ref[...]
    # dropout layers are identity (inference / eval semantics)

    # ---- residual + LayerNorm. NOTE: the PyTorch module constructs a FRESH nn.LayerNorm
    # inside forward(), so gamma=1, beta=0, eps=1e-5 is the faithful semantics. ----
    a = x_res + att_out
    mu = jnp.mean(a, axis=-1, keepdims=True)
    var = jnp.mean(jnp.square(a - mu), axis=-1, keepdims=True)
    a = (a - mu) * jax.lax.rsqrt(var + 1e-5)

    # ---- feedforward (Linear -> ReLU -> Linear), weights pre-transposed on host ----
    h1 = jnp.dot(a.astype(cdt), w1_ref[...],
                 preferred_element_type=jnp.float32) + b1_ref[...]
    h1 = jnp.maximum(h1, 0.0)
    c = jnp.dot(h1.astype(cdt), w2_ref[...],
                preferred_element_type=jnp.float32) + b2_ref[...]

    # ---- residual + LayerNorm ----
    b = a + c
    mu2 = jnp.mean(b, axis=-1, keepdims=True)
    var2 = jnp.mean(jnp.square(b - mu2), axis=-1, keepdims=True)
    out_ref[...] = ((b - mu2) * jax.lax.rsqrt(var2 + 1e-5)
                    ).reshape(Bt, T, D).astype(out_ref.dtype)


def _vmem_estimate_bytes(Bt, T, D, n_heads, d_hidden,
                         x_itemsize, out_itemsize, attw_itemsize, cdt_itemsize):
    """Rough resident-set estimate used to size block_b and vmem_limit_bytes."""
    weights = cdt_itemsize * (3 * D * D + D * D + D * d_hidden + d_hidden * D) \
        + 4 * (3 * D + D + d_hidden + D)                                 # resident once
    blocks = 2 * (Bt * T * D * (x_itemsize + out_itemsize)
                  + Bt * n_heads * T * T * attw_itemsize)                # double-buffered
    scratch = Bt * T * D * cdt_itemsize                                  # ctx slab
    live = Bt * T * (3 * D * (4 + cdt_itemsize) + 2 * D * 4 + d_hidden * 4) \
        + Bt * T * T * 8                                                 # qkv/q/k/v/a/h1 + s,p
    return weights + blocks + scratch + live


def transformer_block(x, params, n_heads, *, block_b=None,
                      compute_dtype=jnp.float32, attw_dtype=jnp.float32):
    B, T, D = x.shape
    win, bin_, wout, bout, w1, b1, w2, b2 = params
    d_hidden = w1.shape[0]
    hd = D // n_heads

    # ---- host-side (one-time) weight prep: pre-transpose so the kernel's MXU consumes the
    # stored layout, and fold the 1/sqrt(hd) scale into the Q columns of in_proj. ----
    q_scale = jnp.concatenate([jnp.full((D,), 1.0 / np.sqrt(hd), jnp.float32),
                               jnp.ones((2 * D,), jnp.float32)])
    win_t = (jnp.asarray(win, jnp.float32).T * q_scale[None, :]).astype(compute_dtype)  # (D,3D)
    bin_f = jnp.asarray(bin_, jnp.float32) * q_scale[None, :]                           # (1,3D)
    wout_t = jnp.asarray(wout, jnp.float32).T.astype(compute_dtype)                     # (D,D)
    w1_t = jnp.asarray(w1, jnp.float32).T.astype(compute_dtype)                         # (D,dh)
    w2_t = jnp.asarray(w2, jnp.float32).T.astype(compute_dtype)                         # (dh,D)
    bout_f = jnp.asarray(bout, jnp.float32)
    b1_f = jnp.asarray(b1, jnp.float32)
    b2_f = jnp.asarray(b2, jnp.float32)

    # ---- block_b / vmem_limit sizing from the actual resident set ----
    x_isz = np.dtype(x.dtype).itemsize
    out_isz = x_isz
    attw_isz = np.dtype(attw_dtype).itemsize
    cdt_isz = np.dtype(compute_dtype).itemsize
    try:
        phys_vmem = int(pltpu.get_tpu_info().vmem_capacity_bytes)
    except Exception:
        phys_vmem = 64 * 1024 * 1024          # conservative: v7x-sized VMEM
    budget = phys_vmem // 2                   # headroom for compiler scratch / pipelining

    est = functools.partial(_vmem_estimate_bytes, T=T, D=D, n_heads=n_heads,
                            d_hidden=d_hidden, x_itemsize=x_isz, out_itemsize=out_isz,
                            attw_itemsize=attw_isz, cdt_itemsize=cdt_isz)
    if block_b is None:
        divisors = [d for d in range(1, B + 1) if B % d == 0]
        fitting = [d for d in divisors if est(d) <= budget] or [1]
        # prefer >= 2 grid steps so the "parallel" batch axis can split across 2 TensorCores
        multi = [d for d in fitting if B // d >= 2]
        block_b = max(multi) if multi else max(fitting)
    assert B % block_b == 0, "block_b must divide B"
    Bt = block_b

    vmem_limit = int(min(max(est(Bt) * 3 // 2, 32 * 1024 * 1024), int(phys_vmem * 0.9)))

    def resident():
        # whole array kept in VMEM once (single-buffered; never re-fetched across grid steps)
        return pl.BlockSpec(memory_space=pltpu.MemorySpace.VMEM)

    kernel = functools.partial(transformer_block_kernel,
                               n_heads=n_heads, compute_dtype=compute_dtype)
    return pl.pallas_call(
        kernel,
        out_shape=(
            jax.ShapeDtypeStruct((B, T, D), x.dtype),
            jax.ShapeDtypeStruct((B, n_heads, T, T), attw_dtype),
        ),
        grid=(B // Bt,),
        in_specs=[
            pl.BlockSpec((Bt, T, D), lambda b: (b, 0, 0)),
            resident(), resident(), resident(), resident(),
            resident(), resident(), resident(), resident(),
        ],
        out_specs=[
            pl.BlockSpec((Bt, T, D), lambda b: (b, 0, 0)),
            pl.BlockSpec((Bt, n_heads, T, T), lambda b: (b, 0, 0, 0)),
        ],
        scratch_shapes=[pltpu.VMEM((Bt * T, D), compute_dtype)],
        compiler_params=pltpu.CompilerParams(
            dimension_semantics=("parallel",),      # batch blocks are independent
            vmem_limit_bytes=vmem_limit),
    )(x, win_t, bin_f, wout_t, bout_f, w1_t, b1_f, w2_t, b2_f)


def reference(x, params, n_heads):
    """Pure-JAX reference of the same forward pass (for sanity checks)."""
    win, bin_, wout, bout, w1, b1, w2, b2 = params
    B, T, D = x.shape
    hd = D // n_heads
    scale = 1.0 / float(np.sqrt(hd))
    qkv = jnp.einsum('btd,ed->bte', x, win) + bin_[0]
    q, k, v = qkv[..., :D], qkv[..., D:2 * D], qkv[..., 2 * D:]
    q = q.reshape(B, T, n_heads, hd).transpose(0, 2, 1, 3)
    k = k.reshape(B, T, n_heads, hd).transpose(0, 2, 1, 3)
    v = v.reshape(B, T, n_heads, hd).transpose(0, 2, 1, 3)
    s = jnp.einsum('bhqd,bhkd->bhqk', q, k) * scale
    p = jax.nn.softmax(s, axis=-1)
    ctx = jnp.einsum('bhqk,bhkd->bhqd', p, v).transpose(0, 2, 1, 3).reshape(B, T, D)
    att_out = jnp.einsum('btd,ed->bte', ctx, wout) + bout[0]

    def ln(z):
        mu = jnp.mean(z, axis=-1, keepdims=True)
        var = jnp.mean((z - mu) ** 2, axis=-1, keepdims=True)
        return (z - mu) * jax.lax.rsqrt(var + 1e-5)

    a = ln(x + att_out)
    h1 = jnp.maximum(jnp.einsum('btd,ed->bte', a, w1) + b1[0], 0.0)
    c = jnp.einsum('bte,de->btd', h1, w2) + b2[0]
    return ln(a + c), p


if __name__ == "__main__":
    B, T = 4, 8
    full_dims = 32          # D (n_heads * head_dim)
    n_heads = 4
    d_hidden = 64

    key = jax.random.PRNGKey(0)
    keys = jax.random.split(key, 10)
    x = jax.random.normal(keys[0], (B, T, full_dims), dtype=jnp.float32)

    s = 0.1
    params = (
        jax.random.normal(keys[1], (3 * full_dims, full_dims), jnp.float32) * s,  # in_proj_weight
        jax.random.normal(keys[2], (1, 3 * full_dims), jnp.float32) * s,          # in_proj_bias
        jax.random.normal(keys[3], (full_dims, full_dims), jnp.float32) * s,      # out_proj.weight
        jax.random.normal(keys[4], (1, full_dims), jnp.float32) * s,              # out_proj.bias
        jax.random.normal(keys[5], (d_hidden, full_dims), jnp.float32) * s,       # ff1.weight
        jax.random.normal(keys[6], (1, d_hidden), jnp.float32) * s,               # ff1.bias
        jax.random.normal(keys[7], (full_dims, d_hidden), jnp.float32) * s,       # ff2.weight
        jax.random.normal(keys[8], (1, full_dims), jnp.float32) * s,              # ff2.bias
    )

    ref_out, ref_attw = reference(x, params, n_heads)

    # f32 matmul path (auto block_b / vmem sizing); tolerance covers the approximate
    # EUP reciprocal in the softmax.
    out, attw = transformer_block(x, params, n_heads)
    jax.block_until_ready((out, attw))
    np.testing.assert_allclose(np.asarray(out), np.asarray(ref_out), atol=1e-2, rtol=1e-2)
    np.testing.assert_allclose(np.asarray(attw), np.asarray(ref_attw), atol=1e-2, rtol=1e-2)
    assert out.shape == (B, T, full_dims)
    assert attw.shape == (B, n_heads, T, T)

    # bf16 activations + bf16 matmul inputs / f32 accumulation path (MXU-native on v6e/v7x):
    # x itself passed in bf16 (no f32 round-trip inside the kernel); loose sanity check.
    out16, attw16 = transformer_block(x.astype(jnp.bfloat16), params, n_heads,
                                      block_b=2, compute_dtype=jnp.bfloat16)
    jax.block_until_ready((out16, attw16))
    np.testing.assert_allclose(np.asarray(out16.astype(jnp.float32)), np.asarray(ref_out),
                               atol=1e-1, rtol=1e-1)
    np.testing.assert_allclose(np.asarray(attw16), np.asarray(ref_attw), atol=1e-1, rtol=1e-1)

    print("KERNEL_OK")
</pallas_src>

<mosaic_0001>
module attributes {stable_mosaic.version = 11 : i64} {
  func.func @transformer_block_kernel(%arg0: i32, %arg1: memref<2x8x32xf32, #tpu.memory_space<vmem>>, %arg2: memref<32x96xf32, #tpu.memory_space<vmem>>, %arg3: memref<1x96xf32, #tpu.memory_space<vmem>>, %arg4: memref<32x32xf32, #tpu.memory_space<vmem>>, %arg5: memref<1x32xf32, #tpu.memory_space<vmem>>, %arg6: memref<32x64xf32, #tpu.memory_space<vmem>>, %arg7: memref<1x64xf32, #tpu.memory_space<vmem>>, %arg8: memref<64x32xf32, #tpu.memory_space<vmem>>, %arg9: memref<1x32xf32, #tpu.memory_space<vmem>>, %arg10: memref<2x8x32xf32, #tpu.memory_space<vmem>>, %arg11: memref<2x4x8x8xf32, #tpu.memory_space<vmem>>, %arg12: memref<16x32xf32, #tpu.memory_space<vmem>>) attributes {dimension_semantics = [#tpu.dimension_semantics<parallel>], iteration_bounds = array<i64: 2>, scalar_prefetch = 0 : i64, scratch_operands = 1 : i64, tpu.core_type = #tpu.core_type<tc>, window_params = [{transform_indices = @transform_0, window_bounds = array<i64: 2, 8, 32>}, {pipeline_mode = #tpu.pipeline_mode<synchronous>, transform_indices = @transform_1, window_bounds = array<i64: 32, 96>}, {pipeline_mode = #tpu.pipeline_mode<synchronous>, transform_indices = @transform_2, window_bounds = array<i64: 1, 96>}, {pipeline_mode = #tpu.pipeline_mode<synchronous>, transform_indices = @transform_3, window_bounds = array<i64: 32, 32>}, {pipeline_mode = #tpu.pipeline_mode<synchronous>, transform_indices = @transform_4, window_bounds = array<i64: 1, 32>}, {pipeline_mode = #tpu.pipeline_mode<synchronous>, transform_indices = @transform_5, window_bounds = array<i64: 32, 64>}, {pipeline_mode = #tpu.pipeline_mode<synchronous>, transform_indices = @transform_6, window_bounds = array<i64: 1, 64>}, {pipeline_mode = #tpu.pipeline_mode<synchronous>, transform_indices = @transform_7, window_bounds = array<i64: 64, 32>}, {pipeline_mode = #tpu.pipeline_mode<synchronous>, transform_indices = @transform_8, window_bounds = array<i64: 1, 32>}, {transform_indices = @transform_9, window_bounds = array<i64: 2, 8, 32>}, {transform_indices = @transform_10, window_bounds = array<i64: 2, 4, 8, 8>}]} {
    %c0 = arith.constant 0 : index
    %c0_0 = arith.constant 0 : index
    %c0_1 = arith.constant 0 : index
    %0 = vector.load %arg1[%c0, %c0_0, %c0_1] : memref<2x8x32xf32, #tpu.memory_space<vmem>>, vector<2x8x32xf32>
    %1 = vector.shape_cast %0 : vector<2x8x32xf32> to vector<16x32xf32>
    %2 = vector.shape_cast %0 : vector<2x8x32xf32> to vector<16x32xf32>
    %c0_2 = arith.constant 0 : index
    %c0_3 = arith.constant 0 : index
    %3 = vector.load %arg2[%c0_2, %c0_3] : memref<32x96xf32, #tpu.memory_space<vmem>>, vector<32x96xf32>
    %cst = arith.constant dense<0.000000e+00> : vector<16x96xf32>
    %4 = tpu.matmul %1, %3, %cst {dimension_numbers = #tpu.dot_dimension_numbers<[1], [0], [0], [1], [0, 0, 1, 1], [], []>} : vector<16x32xf32>, vector<32x96xf32>, vector<16x96xf32> -> vector<16x96xf32>
    %c0_4 = arith.constant 0 : index
    %c0_5 = arith.constant 0 : index
    %5 = vector.load %arg3[%c0_4, %c0_5] : memref<1x96xf32, #tpu.memory_space<vmem>>, vector<1x96xf32>
    %6 = vector.broadcast %5 : vector<1x96xf32> to vector<16x96xf32>
    %7 = arith.addf %4, %6 : vector<16x96xf32>
    %8 = vector.extract_strided_slice %7 {offsets = [0, 0], sizes = [16, 32], strides = [1, 1]} : vector<16x96xf32> to vector<16x32xf32>
    %9 = vector.shape_cast %8 : vector<16x32xf32> to vector<2x8x32xf32>
    %10 = vector.extract_strided_slice %7 {offsets = [0, 32], sizes = [16, 32], strides = [1, 1]} : vector<16x96xf32> to vector<16x32xf32>
    %11 = vector.shape_cast %10 : vector<16x32xf32> to vector<2x8x32xf32>
    %12 = vector.extract_strided_slice %7 {offsets = [0, 64], sizes = [16, 32], strides = [1, 1]} : vector<16x96xf32> to vector<16x32xf32>
    %13 = vector.shape_cast %12 : vector<16x32xf32> to vector<2x8x32xf32>
    %14 = vector.extract_strided_slice %9 {offsets = [0, 0, 0], sizes = [2, 8, 8], strides = [1, 1, 1]} : vector<2x8x32xf32> to vector<2x8x8xf32>
    %15 = vector.extract_strided_slice %11 {offsets = [0, 0, 0], sizes = [2, 8, 8], strides = [1, 1, 1]} : vector<2x8x32xf32> to vector<2x8x8xf32>
    "tpu.trace_start"() <{level = 10 : i32, message = "bqd,bkd->bqk"}> : () -> ()
    %cst_6 = arith.constant dense<0.000000e+00> : vector<2x8x8xf32>
    %16 = tpu.matmul %14, %15, %cst_6 {dimension_numbers = #tpu.dot_dimension_numbers<[2], [2], [1], [1], [0, 0, 0, 1, 1, 1], [0], [0]>} : vector<2x8x8xf32>, vector<2x8x8xf32>, vector<2x8x8xf32> -> vector<2x8x8xf32>
    "tpu.trace_stop"() : () -> ()
    %cst_7 = arith.constant dense<0xFF800000> : vector<2x8xf32>
    %17 = vector.multi_reduction <maximumf>, %16, %cst_7 [2] : vector<2x8x8xf32> to vector<2x8xf32>
    %18 = vector.shape_cast %17 : vector<2x8xf32> to vector<2x8x1xf32>
    %19 = vector.broadcast %18 : vector<2x8x1xf32> to vector<2x8x8xf32>
    %20 = arith.subf %16, %19 : vector<2x8x8xf32>
    %21 = math.exp %20 : vector<2x8x8xf32>
    %cst_8 = arith.constant dense<0.000000e+00> : vector<2x8xf32>
    %22 = vector.multi_reduction <add>, %21, %cst_8 [2] : vector<2x8x8xf32> to vector<2x8xf32>
    %23 = vector.shape_cast %22 : vector<2x8xf32> to vector<2x8x1xf32>
    %24 = tpu.reciprocal %23 {approx = true} : vector<2x8x1xf32> -> vector<2x8x1xf32>
    %25 = vector.broadcast %24 : vector<2x8x1xf32> to vector<2x8x8xf32>
    %26 = arith.mulf %21, %25 : vector<2x8x8xf32>
    %27 = vector.shape_cast %26 : vector<2x8x8xf32> to vector<2x1x8x8xf32>
    %c0_9 = arith.constant 0 : index
    %c0_10 = arith.constant 0 : index
    %c0_11 = arith.constant 0 : index
    %c0_12 = arith.constant 0 : index
    %28 = vector.load %arg11[%c0_9, %c0_10, %c0_11, %c0_12] : memref<2x4x8x8xf32, #tpu.memory_space<vmem>>, vector<2x1x8x8xf32>
    tpu.vector_store %arg11[%c0_9, %c0_10, %c0_11, %c0_12], %27 {strides = array<i32>} : memref<2x4x8x8xf32, #tpu.memory_space<vmem>>, vector<2x1x8x8xf32>,
    %29 = vector.extract_strided_slice %13 {offsets = [0, 0, 0], sizes = [2, 8, 8], strides = [1, 1, 1]} : vector<2x8x32xf32> to vector<2x8x8xf32>
    "tpu.trace_start"() <{level = 10 : i32, message = "bqk,bkd->bqd"}> : () -> ()
    %cst_13 = arith.constant dense<0.000000e+00> : vector<2x8x8xf32>
    %30 = tpu.matmul %26, %29, %cst_13 {dimension_numbers = #tpu.dot_dimension_numbers<[2], [1], [1], [2], [0, 0, 0, 1, 1, 2], [0], [0]>} : vector<2x8x8xf32>, vector<2x8x8xf32>, vector<2x8x8xf32> -> vector<2x8x8xf32>
    "tpu.trace_stop"() : () -> ()
    %31 = vector.shape_cast %30 : vector<2x8x8xf32> to vector<16x8xf32>
    %c0_14 = arith.constant 0 : index
    %c0_15 = arith.constant 0 : index
    %32 = vector.load %arg12[%c0_14, %c0_15] : memref<16x32xf32, #tpu.memory_space<vmem>>, vector<16x8xf32>
    tpu.vector_store %arg12[%c0_14, %c0_15], %31 {strides = array<i32>} : memref<16x32xf32, #tpu.memory_space<vmem>>, vector<16x8xf32>,
    %33 = vector.extract_strided_slice %9 {offsets = [0, 0, 8], sizes = [2, 8, 8], strides = [1, 1, 1]} : vector<2x8x32xf32> to vector<2x8x8xf32>
    %34 = vector.extract_strided_slice %11 {offsets = [0, 0, 8], sizes = [2, 8, 8], strides = [1, 1, 1]} : vector<2x8x32xf32> to vector<2x8x8xf32>
    "tpu.trace_start"() <{level = 10 : i32, message = "bqd,bkd->bqk"}> : () -> ()
    %cst_16 = arith.constant dense<0.000000e+00> : vector<2x8x8xf32>
    %35 = tpu.matmul %33, %34, %cst_16 {dimension_numbers = #tpu.dot_dimension_numbers<[2], [2], [1], [1], [0, 0, 0, 1, 1, 1], [0], [0]>} : vector<2x8x8xf32>, vector<2x8x8xf32>, vector<2x8x8xf32> -> vector<2x8x8xf32>
    "tpu.trace_stop"() : () -> ()
    %cst_17 = arith.constant dense<0xFF800000> : vector<2x8xf32>
    %36 = vector.multi_reduction <maximumf>, %35, %cst_17 [2] : vector<2x8x8xf32> to vector<2x8xf32>
    %37 = vector.shape_cast %36 : vector<2x8xf32> to vector<2x8x1xf32>
    %38 = vector.broadcast %37 : vector<2x8x1xf32> to vector<2x8x8xf32>
    %39 = arith.subf %35, %38 : vector<2x8x8xf32>
    %40 = math.exp %39 : vector<2x8x8xf32>
    %cst_18 = arith.constant dense<0.000000e+00> : vector<2x8xf32>
    %41 = vector.multi_reduction <add>, %40, %cst_18 [2] : vector<2x8x8xf32> to vector<2x8xf32>
    %42 = vector.shape_cast %41 : vector<2x8xf32> to vector<2x8x1xf32>
    %43 = tpu.reciprocal %42 {approx = true} : vector<2x8x1xf32> -> vector<2x8x1xf32>
    %44 = vector.broadcast %43 : vector<2x8x1xf32> to vector<2x8x8xf32>
    %45 = arith.mulf %40, %44 : vector<2x8x8xf32>
    %46 = vector.shape_cast %45 : vector<2x8x8xf32> to vector<2x1x8x8xf32>
    %c0_19 = arith.constant 0 : index
    %c1 = arith.constant 1 : index
    %c0_20 = arith.constant 0 : index
    %c0_21 = arith.constant 0 : index
    %47 = vector.load %arg11[%c0_19, %c1, %c0_20, %c0_21] : memref<2x4x8x8xf32, #tpu.memory_space<vmem>>, vector<2x1x8x8xf32>
    tpu.vector_store %arg11[%c0_19, %c1, %c0_20, %c0_21], %46 {strides = array<i32>} : memref<2x4x8x8xf32, #tpu.memory_space<vmem>>, vector<2x1x8x8xf32>,
    %48 = vector.extract_strided_slice %13 {offsets = [0, 0, 8], sizes = [2, 8, 8], strides = [1, 1, 1]} : vector<2x8x32xf32> to vector<2x8x8xf32>
    "tpu.trace_start"() <{level = 10 : i32, message = "bqk,bkd->bqd"}> : () -> ()
    %cst_22 = arith.constant dense<0.000000e+00> : vector<2x8x8xf32>
    %49 = tpu.matmul %45, %48, %cst_22 {dimension_numbers = #tpu.dot_dimension_numbers<[2], [1], [1], [2], [0, 0, 0, 1, 1, 2], [0], [0]>} : vector<2x8x8xf32>, vector<2x8x8xf32>, vector<2x8x8xf32> -> vector<2x8x8xf32>
    "tpu.trace_stop"() : () -> ()
    %50 = vector.shape_cast %49 : vector<2x8x8xf32> to vector<16x8xf32>
    %c0_23 = arith.constant 0 : index
    %c8 = arith.constant 8 : index
    %51 = vector.load %arg12[%c0_23, %c8] : memref<16x32xf32, #tpu.memory_space<vmem>>, vector<16x8xf32>
    tpu.vector_store %arg12[%c0_23, %c8], %50 {strides = array<i32>} : memref<16x32xf32, #tpu.memory_space<vmem>>, vector<16x8xf32>,
    %52 = vector.extract_strided_slice %9 {offsets = [0, 0, 16], sizes = [2, 8, 8], strides = [1, 1, 1]} : vector<2x8x32xf32> to vector<2x8x8xf32>
    %53 = vector.extract_strided_slice %11 {offsets = [0, 0, 16], sizes = [2, 8, 8], strides = [1, 1, 1]} : vector<2x8x32xf32> to vector<2x8x8xf32>
    "tpu.trace_start"() <{level = 10 : i32, message = "bqd,bkd->bqk"}> : () -> ()
    %cst_24 = arith.constant dense<0.000000e+00> : vector<2x8x8xf32>
    %54 = tpu.matmul %52, %53, %cst_24 {dimension_numbers = #tpu.dot_dimension_numbers<[2], [2], [1], [1], [0, 0, 0, 1, 1, 1], [0], [0]>} : vector<2x8x8xf32>, vector<2x8x8xf32>, vector<2x8x8xf32> -> vector<2x8x8xf32>
    "tpu.trace_stop"() : () -> ()
    %cst_25 = arith.constant dense<0xFF800000> : vector<2x8xf32>
    %55 = vector.multi_reduction <maximumf>, %54, %cst_25 [2] : vector<2x8x8xf32> to vector<2x8xf32>
    %56 = vector.shape_cast %55 : vector<2x8xf32> to vector<2x8x1xf32>
    %57 = vector.broadcast %56 : vector<2x8x1xf32> to vector<2x8x8xf32>
    %58 = arith.subf %54, %57 : vector<2x8x8xf32>
    %59 = math.exp %58 : vector<2x8x8xf32>
    %cst_26 = arith.constant dense<0.000000e+00> : vector<2x8xf32>
    %60 = vector.multi_reduction <add>, %59, %cst_26 [2] : vector<2x8x8xf32> to vector<2x8xf32>
    %61 = vector.shape_cast %60 : vector<2x8xf32> to vector<2x8x1xf32>
    %62 = tpu.reciprocal %61 {approx = true} : vector<2x8x1xf32> -> vector<2x8x1xf32>
    %63 = vector.broadcast %62 : vector<2x8x1xf32> to vector<2x8x8xf32>
    %64 = arith.mulf %59, %63 : vector<2x8x8xf32>
    %65 = vector.shape_cast %64 : vector<2x8x8xf32> to vector<2x1x8x8xf32>
    %c0_27 = arith.constant 0 : index
    %c2 = arith.constant 2 : index
    %c0_28 = arith.constant 0 : index
    %c0_29 = arith.constant 0 : index
    %66 = vector.load %arg11[%c0_27, %c2, %c0_28, %c0_29] : memref<2x4x8x8xf32, #tpu.memory_space<vmem>>, vector<2x1x8x8xf32>
    tpu.vector_store %arg11[%c0_27, %c2, %c0_28, %c0_29], %65 {strides = array<i32>} : memref<2x4x8x8xf32, #tpu.memory_space<vmem>>, vector<2x1x8x8xf32>,
    %67 = vector.extract_strided_slice %13 {offsets = [0, 0, 16], sizes = [2, 8, 8], strides = [1, 1, 1]} : vector<2x8x32xf32> to vector<2x8x8xf32>
    "tpu.trace_start"() <{level = 10 : i32, message = "bqk,bkd->bqd"}> : () -> ()
    %cst_30 = arith.constant dense<0.000000e+00> : vector<2x8x8xf32>
    %68 = tpu.matmul %64, %67, %cst_30 {dimension_numbers = #tpu.dot_dimension_numbers<[2], [1], [1], [2], [0, 0, 0, 1, 1, 2], [0], [0]>} : vector<2x8x8xf32>, vector<2x8x8xf32>, vector<2x8x8xf32> -> vector<2x8x8xf32>
    "tpu.trace_stop"() : () -> ()
    %69 = vector.shape_cast %68 : vector<2x8x8xf32> to vector<16x8xf32>
    %c0_31 = arith.constant 0 : index
    %c16 = arith.constant 16 : index
    %70 = vector.load %arg12[%c0_31, %c16] : memref<16x32xf32, #tpu.memory_space<vmem>>, vector<16x8xf32>
    tpu.vector_store %arg12[%c0_31, %c16], %69 {strides = array<i32>} : memref<16x32xf32, #tpu.memory_space<vmem>>, vector<16x8xf32>,
    %71 = vector.extract_strided_slice %9 {offsets = [0, 0, 24], sizes = [2, 8, 8], strides = [1, 1, 1]} : vector<2x8x32xf32> to vector<2x8x8xf32>
    %72 = vector.extract_strided_slice %11 {offsets = [0, 0, 24], sizes = [2, 8, 8], strides = [1, 1, 1]} : vector<2x8x32xf32> to vector<2x8x8xf32>
    "tpu.trace_start"() <{level = 10 : i32, message = "bqd,bkd->bqk"}> : () -> ()
    %cst_32 = arith.constant dense<0.000000e+00> : vector<2x8x8xf32>
    %73 = tpu.matmul %71, %72, %cst_32 {dimension_numbers = #tpu.dot_dimension_numbers<[2], [2], [1], [1], [0, 0, 0, 1, 1, 1], [0], [0]>} : vector<2x8x8xf32>, vector<2x8x8xf32>, vector<2x8x8xf32> -> vector<2x8x8xf32>
    "tpu.trace_stop"() : () -> ()
    %cst_33 = arith.constant dense<0xFF800000> : vector<2x8xf32>
    %74 = vector.multi_reduction <maximumf>, %73, %cst_33 [2] : vector<2x8x8xf32> to vector<2x8xf32>
    %75 = vector.shape_cast %74 : vector<2x8xf32> to vector<2x8x1xf32>
    %76 = vector.broadcast %75 : vector<2x8x1xf32> to vector<2x8x8xf32>
    %77 = arith.subf %73, %76 : vector<2x8x8xf32>
    %78 = math.exp %77 : vector<2x8x8xf32>
    %cst_34 = arith.constant dense<0.000000e+00> : vector<2x8xf32>
    %79 = vector.multi_reduction <add>, %78, %cst_34 [2] : vector<2x8x8xf32> to vector<2x8xf32>
    %80 = vector.shape_cast %79 : vector<2x8xf32> to vector<2x8x1xf32>
    %81 = tpu.reciprocal %80 {approx = true} : vector<2x8x1xf32> -> vector<2x8x1xf32>
    %82 = vector.broadcast %81 : vector<2x8x1xf32> to vector<2x8x8xf32>
    %83 = arith.mulf %78, %82 : vector<2x8x8xf32>
    %84 = vector.shape_cast %83 : vector<2x8x8xf32> to vector<2x1x8x8xf32>
    %c0_35 = arith.constant 0 : index
    %c3 = arith.constant 3 : index
    %c0_36 = arith.constant 0 : index
    %c0_37 = arith.constant 0 : index
    %85 = vector.load %arg11[%c0_35, %c3, %c0_36, %c0_37] : memref<2x4x8x8xf32, #tpu.memory_space<vmem>>, vector<2x1x8x8xf32>
    tpu.vector_store %arg11[%c0_35, %c3, %c0_36, %c0_37], %84 {strides = array<i32>} : memref<2x4x8x8xf32, #tpu.memory_space<vmem>>, vector<2x1x8x8xf32>,
    %86 = vector.extract_strided_slice %13 {offsets = [0, 0, 24], sizes = [2, 8, 8], strides = [1, 1, 1]} : vector<2x8x32xf32> to vector<2x8x8xf32>
    "tpu.trace_start"() <{level = 10 : i32, message = "bqk,bkd->bqd"}> : () -> ()
    %cst_38 = arith.constant dense<0.000000e+00> : vector<2x8x8xf32>
    %87 = tpu.matmul %83, %86, %cst_38 {dimension_numbers = #tpu.dot_dimension_numbers<[2], [1], [1], [2], [0, 0, 0, 1, 1, 2], [0], [0]>} : vector<2x8x8xf32>, vector<2x8x8xf32>, vector<2x8x8xf32> -> vector<2x8x8xf32>
    "tpu.trace_stop"() : () -> ()
    %88 = vector.shape_cast %87 : vector<2x8x8xf32> to vector<16x8xf32>
    %c0_39 = arith.constant 0 : index
    %c24 = arith.constant 24 : index
    %89 = vector.load %arg12[%c0_39, %c24] : memref<16x32xf32, #tpu.memory_space<vmem>>, vector<16x8xf32>
    tpu.vector_store %arg12[%c0_39, %c24], %88 {strides = array<i32>} : memref<16x32xf32, #tpu.memory_space<vmem>>, vector<16x8xf32>,
    %c0_40 = arith.constant 0 : index
    %c0_41 = arith.constant 0 : index
    %90 = vector.load %arg12[%c0_40, %c0_41] : memref<16x32xf32, #tpu.memory_space<vmem>>, vector<16x32xf32>
    %c0_42 = arith.constant 0 : index
    %c0_43 = arith.constant 0 : index
    %91 = vector.load %arg4[%c0_42, %c0_43] : memref<32x32xf32, #tpu.memory_space<vmem>>, vector<32x32xf32>
    %cst_44 = arith.constant dense<0.000000e+00> : vector<16x32xf32>
    %92 = tpu.matmul %90, %91, %cst_44 {dimension_numbers = #tpu.dot_dimension_numbers<[1], [0], [0], [1], [0, 0, 1, 1], [], []>} : vector<16x32xf32>, vector<32x32xf32>, vector<16x32xf32> -> vector<16x32xf32>
    %c0_45 = arith.constant 0 : index
    %c0_46 = arith.constant 0 : index
    %93 = vector.load %arg5[%c0_45, %c0_46] : memref<1x32xf32, #tpu.memory_space<vmem>>, vector<1x32xf32>
    %94 = vector.broadcast %93 : vector<1x32xf32> to vector<16x32xf32>
    %95 = arith.addf %92, %94 : vector<16x32xf32>
    %96 = arith.addf %2, %95 : vector<16x32xf32>
    %cst_47 = arith.constant dense<0.000000e+00> : vector<16xf32>
    %97 = vector.multi_reduction <add>, %96, %cst_47 [1] : vector<16x32xf32> to vector<16xf32>
    %98 = vector.shape_cast %97 : vector<16xf32> to vector<16x1xf32>
    %cst_48 = arith.constant 3.200000e+01 : f32
    %99 = vector.broadcast %cst_48 : f32 to vector<16x1xf32>
    %100 = arith.divf %98, %99 : vector<16x1xf32>
    %101 = vector.broadcast %100 : vector<16x1xf32> to vector<16x32xf32>
    %102 = arith.subf %96, %101 : vector<16x32xf32>
    %103 = arith.mulf %102, %102 : vector<16x32xf32>
    %cst_49 = arith.constant dense<0.000000e+00> : vector<16xf32>
    %104 = vector.multi_reduction <add>, %103, %cst_49 [1] : vector<16x32xf32> to vector<16xf32>
    %105 = vector.shape_cast %104 : vector<16xf32> to vector<16x1xf32>
    %cst_50 = arith.constant 3.200000e+01 : f32
    %106 = vector.broadcast %cst_50 : f32 to vector<16x1xf32>
    %107 = arith.divf %105, %106 : vector<16x1xf32>
    %108 = vector.broadcast %100 : vector<16x1xf32> to vector<16x32xf32>
    %109 = arith.subf %96, %108 : vector<16x32xf32>
    %cst_51 = arith.constant 9.99999974E-6 : f32
    %110 = vector.broadcast %cst_51 : f32 to vector<16x1xf32>
    %111 = arith.addf %107, %110 : vector<16x1xf32>
    %112 = math.rsqrt %111 : vector<16x1xf32>
    %113 = vector.broadcast %112 : vector<16x1xf32> to vector<16x32xf32>
    %114 = arith.mulf %109, %113 : vector<16x32xf32>
    %c0_52 = arith.constant 0 : index
    %c0_53 = arith.constant 0 : index
    %115 = vector.load %arg6[%c0_52, %c0_53] : memref<32x64xf32, #tpu.memory_space<vmem>>, vector<32x64xf32>
    %cst_54 = arith.constant dense<0.000000e+00> : vector<16x64xf32>
    %116 = tpu.matmul %114, %115, %cst_54 {dimension_numbers = #tpu.dot_dimension_numbers<[1], [0], [0], [1], [0, 0, 1, 1], [], []>} : vector<16x32xf32>, vector<32x64xf32>, vector<16x64xf32> -> vector<16x64xf32>
    %c0_55 = arith.constant 0 : index
    %c0_56 = arith.constant 0 : index
    %117 = vector.load %arg7[%c0_55, %c0_56] : memref<1x64xf32, #tpu.memory_space<vmem>>, vector<1x64xf32>
    %118 = vector.broadcast %117 : vector<1x64xf32> to vector<16x64xf32>
    %119 = arith.addf %116, %118 : vector<16x64xf32>
    %cst_57 = arith.constant 0.000000e+00 : f32
    %120 = vector.broadcast %cst_57 : f32 to vector<16x64xf32>
    %121 = arith.maximumf %119, %120 : vector<16x64xf32>
    %c0_58 = arith.constant 0 : index
    %c0_59 = arith.constant 0 : index
    %122 = vector.load %arg8[%c0_58, %c0_59] : memref<64x32xf32, #tpu.memory_space<vmem>>, vector<64x32xf32>
    %cst_60 = arith.constant dense<0.000000e+00> : vector<16x32xf32>
    %123 = tpu.matmul %121, %122, %cst_60 {dimension_numbers = #tpu.dot_dimension_numbers<[1], [0], [0], [1], [0, 0, 1, 1], [], []>} : vector<16x64xf32>, vector<64x32xf32>, vector<16x32xf32> -> vector<16x32xf32>
    %c0_61 = arith.constant 0 : index
    %c0_62 = arith.constant 0 : index
    %124 = vector.load %arg9[%c0_61, %c0_62] : memref<1x32xf32, #tpu.memory_space<vmem>>, vector<1x32xf32>
    %125 = vector.broadcast %124 : vector<1x32xf32> to vector<16x32xf32>
    %126 = arith.addf %123, %125 : vector<16x32xf32>
    %127 = arith.addf %114, %126 : vector<16x32xf32>
    %cst_63 = arith.constant dense<0.000000e+00> : vector<16xf32>
    %128 = vector.multi_reduction <add>, %127, %cst_63 [1] : vector<16x32xf32> to vector<16xf32>
    %129 = vector.shape_cast %128 : vector<16xf32> to vector<16x1xf32>
    %cst_64 = arith.constant 3.200000e+01 : f32
    %130 = vector.broadcast %cst_64 : f32 to vector<16x1xf32>
    %131 = arith.divf %129, %130 : vector<16x1xf32>
    %132 = vector.broadcast %131 : vector<16x1xf32> to vector<16x32xf32>
    %133 = arith.subf %127, %132 : vector<16x32xf32>
    %134 = arith.mulf %133, %133 : vector<16x32xf32>
    %cst_65 = arith.constant dense<0.000000e+00> : vector<16xf32>
    %135 = vector.multi_reduction <add>, %134, %cst_65 [1] : vector<16x32xf32> to vector<16xf32>
    %136 = vector.shape_cast %135 : vector<16xf32> to vector<16x1xf32>
    %cst_66 = arith.constant 3.200000e+01 : f32
    %137 = vector.broadcast %cst_66 : f32 to vector<16x1xf32>
    %138 = arith.divf %136, %137 : vector<16x1xf32>
    %139 = vector.broadcast %131 : vector<16x1xf32> to vector<16x32xf32>
    %140 = arith.subf %127, %139 : vector<16x32xf32>
    %cst_67 = arith.constant 9.99999974E-6 : f32
    %141 = vector.broadcast %cst_67 : f32 to vector<16x1xf32>
    %142 = arith.addf %138, %141 : vector<16x1xf32>
    %143 = math.rsqrt %142 : vector<16x1xf32>
    %144 = vector.broadcast %143 : vector<16x1xf32> to vector<16x32xf32>
    %145 = arith.mulf %140, %144 : vector<16x32xf32>
    %146 = vector.shape_cast %145 : vector<16x32xf32> to vector<2x8x32xf32>
    %c0_68 = arith.constant 0 : index
    %c0_69 = arith.constant 0 : index
    %c0_70 = arith.constant 0 : index
    %147 = vector.load %arg10[%c0_68, %c0_69, %c0_70] : memref<2x8x32xf32, #tpu.memory_space<vmem>>, vector<2x8x32xf32>
    tpu.vector_store %arg10[%c0_68, %c0_69, %c0_70], %146 {strides = array<i32>} : memref<2x8x32xf32, #tpu.memory_space<vmem>>, vector<2x8x32xf32>,
    return
  }
  func.func @transform_0(%arg0: i32) -> (i32, i32, i32) {
    %c0_i32 = arith.constant 0 : i32
    %c0_i32_0 = arith.constant 0 : i32
    %c0_i32_1 = arith.constant 0 : i32
    return %arg0, %c0_i32, %c0_i32_0 : i32, i32, i32
  }
  func.func @transform_1(%arg0: i32) -> (i32, i32) {
    %c0_i32 = arith.constant 0 : i32
    %c0_i32_0 = arith.constant 0 : i32
    %c0_i32_1 = arith.constant 0 : i32
    return %c0_i32, %c0_i32_0 : i32, i32
  }
  func.func @transform_2(%arg0: i32) -> (i32, i32) {
    %c0_i32 = arith.constant 0 : i32
    %c0_i32_0 = arith.constant 0 : i32
    %c0_i32_1 = arith.constant 0 : i32
    return %c0_i32, %c0_i32_0 : i32, i32
  }
  func.func @transform_3(%arg0: i32) -> (i32, i32) {
    %c0_i32 = arith.constant 0 : i32
    %c0_i32_0 = arith.constant 0 : i32
    %c0_i32_1 = arith.constant 0 : i32
    return %c0_i32, %c0_i32_0 : i32, i32
  }
  func.func @transform_4(%arg0: i32) -> (i32, i32) {
    %c0_i32 = arith.constant 0 : i32
    %c0_i32_0 = arith.constant 0 : i32
    %c0_i32_1 = arith.constant 0 : i32
    return %c0_i32, %c0_i32_0 : i32, i32
  }
  func.func @transform_5(%arg0: i32) -> (i32, i32) {
    %c0_i32 = arith.constant 0 : i32
    %c0_i32_0 = arith.constant 0 : i32
    %c0_i32_1 = arith.constant 0 : i32
    return %c0_i32, %c0_i32_0 : i32, i32
  }
  func.func @transform_6(%arg0: i32) -> (i32, i32) {
    %c0_i32 = arith.constant 0 : i32
    %c0_i32_0 = arith.constant 0 : i32
    %c0_i32_1 = arith.constant 0 : i32
    return %c0_i32, %c0_i32_0 : i32, i32
  }
  func.func @transform_7(%arg0: i32) -> (i32, i32) {
    %c0_i32 = arith.constant 0 : i32
    %c0_i32_0 = arith.constant 0 : i32
    %c0_i32_1 = arith.constant 0 : i32
    return %c0_i32, %c0_i32_0 : i32, i32
  }
  func.func @transform_8(%arg0: i32) -> (i32, i32) {
    %c0_i32 = arith.constant 0 : i32
    %c0_i32_0 = arith.constant 0 : i32
    %c0_i32_1 = arith.constant 0 : i32
    return %c0_i32, %c0_i32_0 : i32, i32
  }
  func.func @transform_9(%arg0: i32) -> (i32, i32, i32) {
    %c0_i32 = arith.constant 0 : i32
    %c0_i32_0 = arith.constant 0 : i32
    %c0_i32_1 = arith.constant 0 : i32
    return %arg0, %c0_i32, %c0_i32_0 : i32, i32, i32
  }
  func.func @transform_10(%arg0: i32) -> (i32, i32, i32, i32) {
    %c0_i32 = arith.constant 0 : i32
    %c0_i32_0 = arith.constant 0 : i32
    %c0_i32_1 = arith.constant 0 : i32
    %c0_i32_2 = arith.constant 0 : i32
    return %arg0, %c0_i32, %c0_i32_0, %c0_i32_1 : i32, i32, i32, i32
  }
}

</mosaic_0001>

<llo_original>
// kernel: tpu_custom_call.1
$region0: #{tpu_custom_call.1}
  #allocation0 [shape = 'u32[]', space=smem, size = 0x4, offset = 0x4, fixed_abs, tag = 'smem constant byte address 0x4 - core index']
  #allocation1 [shape = 'u32[144,128]{1,0:T(1,128)}', space=vmem, size = 0x12000, scoped, tag = 'internal scratch']
  #allocation2 [shape = 'f32[16,32]{1,0:T(8,128)}', space=vmem, size = 0x2000, scoped, tag = 'scratch operand']
  %s0 = inlined_call_operand.vmem [shape: f32[4,8,32], index: 0, kind: input, shape index: {}]
  %s1 = inlined_call_operand.vmem [shape: f32[32,96], index: 1, kind: input, shape index: {}]
  %s2 = inlined_call_operand.vmem [shape: f32[1,96], index: 2, kind: input, shape index: {}]
  %s3 = inlined_call_operand.vmem [shape: f32[32,32], index: 3, kind: input, shape index: {}]
  %s4 = inlined_call_operand.vmem [shape: f32[1,32], index: 4, kind: input, shape index: {}]
  %s5 = inlined_call_operand.hbm [shape: f32[32,64], index: 5, kind: input, shape index: {}]
  %s6 = inlined_call_operand.vmem [shape: f32[1,64], index: 6, kind: input, shape index: {}]
  %s7 = inlined_call_operand.vmem [shape: f32[64,32], index: 7, kind: input, shape index: {}]
  %s8 = inlined_call_operand.vmem [shape: f32[1,32], index: 8, kind: input, shape index: {}]
  %s9 = inlined_call_operand.hbm [shape: f32[4,8,32], index: 9, kind: output, shape index: {0}]
  %s10 = inlined_call_operand.hbm [shape: f32[4,4,8,8], index: 10, kind: output, shape index: {1}]
  %11 = xla_tuple %s9, %s10
  %s12 = sld [smem:[#allocation0]]
  $region81: #{tpu_custom_call.1} parent=0
    _
  %s14 = ssub.s32 1, %s12
  %s15 = scalar_select 0, %s14, %s12
  $region1: #{tpu_custom_call.1} parent=0
    #allocation3 [shape = 'u8[16384]{0}', space=vmem, size = 0x4000, scoped, tag = 'input window, operand 5, single buffered']
    #allocation4 [shape = 's32[2]{0}', space=sflag, size = 0x8, scoped, tag = 'scoped memory for tpu_custom_call.1']
    #allocation5 [shape = 's32[2]{0}', space=sflag, size = 0x8, scoped, tag = 'scoped memory for tpu_custom_call.1']
    #allocation6 [shape = 'u8[16384]{0}', space=vmem, size = 0x4000, scoped, tag = 'output window, operand 0']
    #allocation7 [shape = 'u8[65536]{0}', space=vmem, size = 0x10000, scoped, tag = 'output window, operand 1']
    #allocation8 [shape = 's32[2]{0}', space=sflag, size = 0x8, scoped, tag = 'scoped memory for tpu_custom_call.1']
    %16 = vsyncpa [#allocation4], 0
    %17 = vsyncpa [#allocation5], 0
    %s18 = scalar_lea.sflag [#allocation5], 1
    %19 = vsyncpa %s18, 0
    %20 = vsyncpa [#allocation8], 0
    %s21 = scalar_lea.sflag [#allocation8], 1
    %22 = vsyncpa %s21, 0
    loop: start=0, step=1, limit=4
    $region2: #{tpu_custom_call.1} parent=1 // loop_pre_header
      _
    $region3: #{tpu_custom_call.1} parent=1 // loop_header
      %s24 = sphi 0, %s28
      %p25 = scmp.ge.s32.totalorder %s24, 4
      %s34 = sphi 0, %s36
      %s37 = sphi 0, %s34
      %s38 = sphi 0, %s37
      %s54 = sphi 0, %s38
      %s58 = sphi 0, %s58
      %s60 = sphi 0, %s58
      %s61 = sphi 0, %s60
      %s75 = sphi 0, %s61
      %s79 = sphi 0, %s79
      %s81 = sphi 0, %s79
      %s82 = sphi 0, %s81
      %s96 = sphi 0, %s82
      %s100 = sphi 0, %s100
      %s102 = sphi 0, %s100
      %s103 = sphi 0, %s102
      %s117 = sphi 0, %s103
      %s121 = sphi 0, %s121
      %s123 = sphi 0, %s121
      %s124 = sphi 0, %s123
      %s138 = sphi 0, %s124
      %s142 = sphi 0, %s142
      %s144 = sphi 0, %s142
      %s145 = sphi 0, %s144
      %s159 = sphi 0, %s145
      %s163 = sphi 0, %s163
      %s165 = sphi 0, %s163
      %s166 = sphi 0, %s165
      %s180 = sphi 0, %s166
      %s184 = sphi 0, %s184
      %s186 = sphi 0, %s184
      %s187 = sphi 0, %s186
      %s201 = sphi 0, %s187
      %s205 = sphi 0, %s205
      %s207 = sphi 0, %s205
      %s208 = sphi 0, %s207
      %s222 = sphi 0, %s208
      %s228 = sphi 0, %s230
      %s231 = sphi 0, %s228
      %s232 = sphi 0, %s231
      %s248 = sphi 0, %s232
      %s254 = sphi 0, %s256
      %s257 = sphi 0, %s254
      %s258 = sphi 0, %s257
      %s274 = sphi 0, %s258
    $region4: #{tpu_custom_call.1} parent=1 // loop_header_branch
      %27 = sbr.rel (%p25) target = $region8
    $region5: #{tpu_custom_call.1} parent=1 // loop_body
      %s29 = ssub.s32 %s24, 1
      %s30 = ssub.s32 %s24, 2
      %s31 = sadd.s32 %s24, 1
      %s32 = ssub.s32 %s24, %s31
      %p33 = scmp.eq.s32.totalorder %s32, 0
      %s35 = sadd.s32 %s34, 1
      %s36 = scalar_select %p33, %s34, %s35
      %p39 = pneg %p33
      %p40 = scmp.eq.s32.totalorder %s24, 1
      %p41 = por %p39, %p40
      %p42 = scmp.ne.s32.totalorder %s34, %s37
      %p43 = scmp.eq.s32.totalorder %s24, 0
      %p44 = por %p42, %p43
      %p45 = scmp.ne.s32.totalorder %s34, %s37
      %p46 = scmp.eq.s32.totalorder %s29, 1
      %p47 = por %p45, %p46
      %p48 = scmp.ne.s32.totalorder %s37, %s38
      %p49 = scmp.eq.s32.totalorder %s29, 0
      %p50 = por %p48, %p49
      %p51 = scmp.ne.s32.totalorder %s37, %s38
      %p52 = scmp.eq.s32.totalorder %s30, 1
      %p53 = por %p51, %p52
      %p55 = scmp.ne.s32.totalorder %s38, %s54
      %p56 = scmp.eq.s32.totalorder %s30, 0
      %p57 = por %p55, %p56
      %s59 = sadd.s32 %s58, 1
      %p62 = scmp.eq.s32.totalorder %s24, 1
      %p63 = scmp.ne.s32.totalorder %s58, %s60
      %p64 = scmp.eq.s32.totalorder %s24, 0
      %p65 = por %p63, %p64
      %p66 = scmp.ne.s32.totalorder %s58, %s60
      %p67 = scmp.eq.s32.totalorder %s29, 1
      %p68 = por %p66, %p67
      %p69 = scmp.ne.s32.totalorder %s60, %s61
      %p70 = scmp.eq.s32.totalorder %s29, 0
      %p71 = por %p69, %p70
      %p72 = scmp.ne.s32.totalorder %s60, %s61
      %p73 = scmp.eq.s32.totalorder %s30, 1
      %p74 = por %p72, %p73
      %p76 = scmp.ne.s32.totalorder %s61, %s75
      %p77 = scmp.eq.s32.totalorder %s30, 0
      %p78 = por %p76, %p77
      %s80 = sadd.s32 %s79, 1
      %p83 = scmp.eq.s32.totalorder %s24, 1
      %p84 = scmp.ne.s32.totalorder %s79, %s81
      %p85 = scmp.eq.s32.totalorder %s24, 0
      %p86 = por %p84, %p85
      %p87 = scmp.ne.s32.totalorder %s79, %s81
      %p88 = scmp.eq.s32.totalorder %s29, 1
      %p89 = por %p87, %p88
      %p90 = scmp.ne.s32.totalorder %s81, %s82
      %p91 = scmp.eq.s32.totalorder %s29, 0
      %p92 = por %p90, %p91
      %p93 = scmp.ne.s32.totalorder %s81, %s82
      %p94 = scmp.eq.s32.totalorder %s30, 1
      %p95 = por %p93, %p94
      %p97 = scmp.ne.s32.totalorder %s82, %s96
      %p98 = scmp.eq.s32.totalorder %s30, 0
      %p99 = por %p97, %p98
      %s101 = sadd.s32 %s100, 1
      %p104 = scmp.eq.s32.totalorder %s24, 1
      %p105 = scmp.ne.s32.totalorder %s100, %s102
      %p106 = scmp.eq.s32.totalorder %s24, 0
      %p107 = por %p105, %p106
      %p108 = scmp.ne.s32.totalorder %s100, %s102
      %p109 = scmp.eq.s32.totalorder %s29, 1
      %p110 = por %p108, %p109
      %p111 = scmp.ne.s32.totalorder %s102, %s103
      %p112 = scmp.eq.s32.totalorder %s29, 0
      %p113 = por %p111, %p112
      %p114 = scmp.ne.s32.totalorder %s102, %s103
      %p115 = scmp.eq.s32.totalorder %s30, 1
      %p116 = por %p114, %p115
      %p118 = scmp.ne.s32.totalorder %s103, %s117
      %p119 = scmp.eq.s32.totalorder %s30, 0
      %p120 = por %p118, %p119
      %s122 = sadd.s32 %s121, 1
      %p125 = scmp.eq.s32.totalorder %s24, 1
      %p126 = scmp.ne.s32.totalorder %s121, %s123
      %p127 = scmp.eq.s32.totalorder %s24, 0
      %p128 = por %p126, %p127
      %p129 = scmp.ne.s32.totalorder %s121, %s123
      %p130 = scmp.eq.s32.totalorder %s29, 1
      %p131 = por %p129, %p130
      %p132 = scmp.ne.s32.totalorder %s123, %s124
      %p133 = scmp.eq.s32.totalorder %s29, 0
      %p134 = por %p132, %p133
      %p135 = scmp.ne.s32.totalorder %s123, %s124
      %p136 = scmp.eq.s32.totalorder %s30, 1
      %p137 = por %p135, %p136
      %p139 = scmp.ne.s32.totalorder %s124, %s138
      %p140 = scmp.eq.s32.totalorder %s30, 0
      %p141 = por %p139, %p140
      %s143 = sadd.s32 %s142, 1
      %p146 = scmp.eq.s32.totalorder %s24, 1
      %p147 = scmp.ne.s32.totalorder %s142, %s144
      %p148 = scmp.eq.s32.totalorder %s24, 0
      %p149 = por %p147, %p148
      %p150 = scmp.ne.s32.totalorder %s142, %s144
      %p151 = scmp.eq.s32.totalorder %s29, 1
      %p152 = por %p150, %p151
      %p153 = scmp.ne.s32.totalorder %s144, %s145
      %p154 = scmp.eq.s32.totalorder %s29, 0
      %p155 = por %p153, %p154
      %p156 = scmp.ne.s32.totalorder %s144, %s145
      %p157 = scmp.eq.s32.totalorder %s30, 1
      %p158 = por %p156, %p157
      %p160 = scmp.ne.s32.totalorder %s145, %s159
      %p161 = scmp.eq.s32.totalorder %s30, 0
      %p162 = por %p160, %p161
      %s164 = sadd.s32 %s163, 1
      %p167 = scmp.eq.s32.totalorder %s24, 1
      %p168 = scmp.ne.s32.totalorder %s163, %s165
      %p169 = scmp.eq.s32.totalorder %s24, 0
      %p170 = por %p168, %p169
      %p171 = scmp.ne.s32.totalorder %s163, %s165
      %p172 = scmp.eq.s32.totalorder %s29, 1
      %p173 = por %p171, %p172
      %p174 = scmp.ne.s32.totalorder %s165, %s166
      %p175 = scmp.eq.s32.totalorder %s29, 0
      %p176 = por %p174, %p175
      %p177 = scmp.ne.s32.totalorder %s165, %s166
      %p178 = scmp.eq.s32.totalorder %s30, 1
      %p179 = por %p177, %p178
      %p181 = scmp.ne.s32.totalorder %s166, %s180
      %p182 = scmp.eq.s32.totalorder %s30, 0
      %p183 = por %p181, %p182
      %s185 = sadd.s32 %s184, 1
      %p188 = scmp.eq.s32.totalorder %s24, 1
      %p189 = scmp.ne.s32.totalorder %s184, %s186
      %p190 = scmp.eq.s32.totalorder %s24, 0
      %p191 = por %p189, %p190
      %p192 = scmp.ne.s32.totalorder %s184, %s186
      %p193 = scmp.eq.s32.totalorder %s29, 1
      %p194 = por %p192, %p193
      %p195 = scmp.ne.s32.totalorder %s186, %s187
      %p196 = scmp.eq.s32.totalorder %s29, 0
      %p197 = por %p195, %p196
      %p198 = scmp.ne.s32.totalorder %s186, %s187
      %p199 = scmp.eq.s32.totalorder %s30, 1
      %p200 = por %p198, %p199
      %p202 = scmp.ne.s32.totalorder %s187, %s201
      %p203 = scmp.eq.s32.totalorder %s30, 0
      %p204 = por %p202, %p203
      %s206 = sadd.s32 %s205, 1
      %p209 = scmp.eq.s32.totalorder %s24, 1
      %p210 = scmp.ne.s32.totalorder %s205, %s207
      %p211 = scmp.eq.s32.totalorder %s24, 0
      %p212 = por %p210, %p211
      %p213 = scmp.ne.s32.totalorder %s205, %s207
      %p214 = scmp.eq.s32.totalorder %s29, 1
      %p215 = por %p213, %p214
      %p216 = scmp.ne.s32.totalorder %s207, %s208
      %p217 = scmp.eq.s32.totalorder %s29, 0
      %p218 = por %p216, %p217
      %p219 = scmp.ne.s32.totalorder %s207, %s208
      %p220 = scmp.eq.s32.totalorder %s30, 1
      %p221 = por %p219, %p220
      %p223 = scmp.ne.s32.totalorder %s208, %s222
      %p224 = scmp.eq.s32.totalorder %s30, 0
      %p225 = por %p223, %p224
      %s226 = ssub.s32 %s24, %s31
      %p227 = scmp.eq.s32.totalorder %s226, 0
      %s229 = sadd.s32 %s228, 1
      %s230 = scalar_select %p227, %s228, %s229
      %p233 = pneg %p227
      %p234 = scmp.eq.s32.totalorder %s24, 1
      %p235 = por %p233, %p234
      %p236 = scmp.ne.s32.totalorder %s228, %s231
      %p237 = scmp.eq.s32.totalorder %s24, 0
      %p238 = por %p236, %p237
      %p239 = scmp.ne.s32.totalorder %s228, %s231
      %p240 = scmp.eq.s32.totalorder %s29, 1
      %p241 = por %p239, %p240
      %p242 = scmp.ne.s32.totalorder %s231, %s232
      %p243 = scmp.eq.s32.totalorder %s29, 0
      %p244 = por %p242, %p243
      %p245 = scmp.ne.s32.totalorder %s231, %s232
      %p246 = scmp.eq.s32.totalorder %s30, 1
      %p247 = por %p245, %p246
      %p249 = scmp.ne.s32.totalorder %s232, %s248
      %p250 = scmp.eq.s32.totalorder %s30, 0
      %p251 = por %p249, %p250
      %s252 = ssub.s32 %s24, %s31
      %p253 = scmp.eq.s32.totalorder %s252, 0
      %s255 = sadd.s32 %s254, 1
      %s256 = scalar_select %p253, %s254, %s255
      %p259 = pneg %p253
      %p260 = scmp.eq.s32.totalorder %s24, 1
      %p261 = por %p259, %p260
      %p262 = scmp.ne.s32.totalorder %s254, %s257
      %p263 = scmp.eq.s32.totalorder %s24, 0
      %p264 = por %p262, %p263
      %p265 = scmp.ne.s32.totalorder %s254, %s257
      %p266 = scmp.eq.s32.totalorder %s29, 1
      %p267 = por %p265, %p266
      %p268 = scmp.ne.s32.totalorder %s257, %s258
      %p269 = scmp.eq.s32.totalorder %s29, 0
      %p270 = por %p268, %p269
      %p271 = scmp.ne.s32.totalorder %s257, %s258
      %p272 = scmp.eq.s32.totalorder %s30, 1
      %p273 = por %p271, %p272
      %p275 = scmp.ne.s32.totalorder %s258, %s274
      %p276 = scmp.eq.s32.totalorder %s30, 0
      %p277 = por %p275, %p276
      %p278 = scmp.le.s32.totalorder 1, %s24
      %p279 = scmp.lt.s32.totalorder %s24, 3
      %p280 = pnand %p278, %p279
      %p281 = pneg %p280
      // Predicated region
      $region9: #{tpu_custom_call.1} parent=5 // pred_check
        _
      $region10: #{tpu_custom_call.1} parent=5 // pred_check_branch
        %283 = sbr.rel (%p280) target = $region12
      $region11: #{tpu_custom_call.1} parent=5 // pred_region
        %s284 = ssub.s32 %s24, 1
        // Predicated region
        $region13: #{tpu_custom_call.1} parent=11 // pred_check
          %p285 = pneg %p71
        $region14: #{tpu_custom_call.1} parent=11 // pred_check_branch
          %287 = sbr.rel (%p285) target = $region16
        $region15: #{tpu_custom_call.1} parent=11 // pred_region
          _
        $region16: #{tpu_custom_call.1} parent=11 // pred_fallthru
          _
        // Predicated region
        $region17: #{tpu_custom_call.1} parent=11 // pred_check
          %p288 = pneg %p92
        $region18: #{tpu_custom_call.1} parent=11 // pred_check_branch
          %290 = sbr.rel (%p288) target = $region20
        $region19: #{tpu_custom_call.1} parent=11 // pred_region
          _
        $region20: #{tpu_custom_call.1} parent=11 // pred_fallthru
          _
        // Predicated region
        $region21: #{tpu_custom_call.1} parent=11 // pred_check
          %p291 = pneg %p113
        $region22: #{tpu_custom_call.1} parent=11 // pred_check_branch
          %293 = sbr.rel (%p291) target = $region24
        $region23: #{tpu_custom_call.1} parent=11 // pred_region
          _
        $region24: #{tpu_custom_call.1} parent=11 // pred_fallthru
          _
        // Predicated region
        $region25: #{tpu_custom_call.1} parent=11 // pred_check
          %p294 = pneg %p134
        $region26: #{tpu_custom_call.1} parent=11 // pred_check_branch
          %296 = sbr.rel (%p294) target = $region28
        $region27: #{tpu_custom_call.1} parent=11 // pred_region
          _
        $region28: #{tpu_custom_call.1} parent=11 // pred_fallthru
          _
        // Predicated region
        $region29: #{tpu_custom_call.1} parent=11 // pred_check
          %p297 = pneg %p155
        $region30: #{tpu_custom_call.1} parent=11 // pred_check_branch
          %299 = sbr.rel (%p297) target = $region32
        $region31: #{tpu_custom_call.1} parent=11 // pred_region
          %s301 = ssub.s32 512, 512
          %302 = vsyncadd [#allocation4], %s301
          %s303 = sshll.u32 [#allocation3], 4
          %s304 = int_to_ptr.vmem [resolvable:$true] %s303
          %309 = dma.hbm_to_vmem [thread:$0]  %s5, 512, %s304, [#allocation4], 128, 128, 8
        $region32: #{tpu_custom_call.1} parent=11 // pred_fallthru
          _
        // Predicated region
        $region33: #{tpu_custom_call.1} parent=11 // pred_check
          %p310 = pneg %p176
        $region34: #{tpu_custom_call.1} parent=11 // pred_check_branch
          %312 = sbr.rel (%p310) target = $region36
        $region35: #{tpu_custom_call.1} parent=11 // pred_region
          _
        $region36: #{tpu_custom_call.1} parent=11 // pred_fallthru
          _
        // Predicated region
        $region37: #{tpu_custom_call.1} parent=11 // pred_check
          %p313 = pneg %p197
        $region38: #{tpu_custom_call.1} parent=11 // pred_check_branch
          %315 = sbr.rel (%p313) target = $region40
        $region39: #{tpu_custom_call.1} parent=11 // pred_region
          _
        $region40: #{tpu_custom_call.1} parent=11 // pred_fallthru
          _
        // Predicated region
        $region41: #{tpu_custom_call.1} parent=11 // pred_check
          %p316 = pneg %p218
        $region42: #{tpu_custom_call.1} parent=11 // pred_check_branch
          %318 = sbr.rel (%p316) target = $region44
        $region43: #{tpu_custom_call.1} parent=11 // pred_region
          _
        $region44: #{tpu_custom_call.1} parent=11 // pred_fallthru
          _
      $region12: #{tpu_custom_call.1} parent=5 // pred_fallthru
        _
      %p319 = scmp.lt.s32.totalorder %s24, 2
      // Predicated region
      $region45: #{tpu_custom_call.1} parent=5 // pred_check
        %p320 = pneg %p319
      $region46: #{tpu_custom_call.1} parent=5 // pred_check_branch
        %322 = sbr.rel (%p320) target = $region48
      $region47: #{tpu_custom_call.1} parent=5 // pred_region
        // Predicated region
        $region49: #{tpu_custom_call.1} parent=47 // pred_check
          %p323 = pneg %p44
        $region50: #{tpu_custom_call.1} parent=47 // pred_check_branch
          %325 = sbr.rel (%p323) target = $region52
        $region51: #{tpu_custom_call.1} parent=47 // pred_region
          %s326 = smul.u32 2, %s24
          %p327 = scmp.lt.s32.totalorder %s326, 3
          %s328 = scalar_select %p327, %s326, 3
          %s329 = smul.addr %s328, 8
          %s330 = scalar_lea.vmem %s0, %s329
          %s331 = smul.u32 2, %s24
        $region52: #{tpu_custom_call.1} parent=47 // pred_fallthru
          _
      $region48: #{tpu_custom_call.1} parent=5 // pred_fallthru
        _
      %p332 = scmp.le.s32.totalorder 1, %s24
      %p333 = scmp.lt.s32.totalorder %s24, 3
      %p334 = pnand %p332, %p333
      %p335 = pneg %p334
      // Predicated region
      $region53: #{tpu_custom_call.1} parent=5 // pred_check
        _
      $region54: #{tpu_custom_call.1} parent=5 // pred_check_branch
        %337 = sbr.rel (%p334) target = $region56
      $region55: #{tpu_custom_call.1} parent=5 // pred_region
        %s338 = ssub.s32 %s24, 1
        // Predicated region
        $region57: #{tpu_custom_call.1} parent=55 // pred_check
          %p339 = pneg %p155
        $region58: #{tpu_custom_call.1} parent=55 // pred_check_branch
          %341 = sbr.rel (%p339) target = $region60
        $region59: #{tpu_custom_call.1} parent=55 // pred_region
          %342 = dma.done [#allocation4], 512
        $region60: #{tpu_custom_call.1} parent=55 // pred_fallthru
          _
        %s343 = smul.u32 2, %s29
        %p344 = scmp.lt.s32.totalorder %s343, 3
        %s345 = scalar_select %p344, %s343, 3
        %s346 = smul.addr %s345, 8
        %s347 = scalar_lea.vmem %s0, %s346
        %p348 = pneg %p50
        %p349 = pneg %p47
        %p350 = pneg %p71
        %p351 = pneg %p68
        %p352 = pneg %p92
        %p353 = pneg %p89
        %p354 = pneg %p113
        %p355 = pneg %p110
        %p356 = pneg %p134
        %p357 = pneg %p131
        %p358 = pneg %p155
        %p359 = pneg %p152
        %p360 = pneg %p176
        %p361 = pneg %p173
        %p362 = pneg %p197
        %p363 = pneg %p194
        %p364 = pneg %p218
        %p365 = pneg %p215
        %p366 = pneg %p244
        %p367 = pneg %p241
        %s368 = sand.u32 %s231, 1
        %s369 = scalar_lea.sflag [#allocation5], %s368
        %s370 = sand.u32 %s231, 1
        %s371 = smul.addr %s370, 16
        %s372 = scalar_lea.vmem [#allocation6], %s371
        %p373 = pneg %p270
        %p374 = pneg %p267
        %s375 = sand.u32 %s257, 1
        %s376 = scalar_lea.sflag [#allocation8], %s375
        %s377 = sand.u32 %s257, 1
        %s378 = smul.addr %s377, 64
        %s379 = scalar_lea.vmem [#allocation7], %s378
        %s380 = smul.u32 2, %s29
        %p381 = scmp.lt.s32.totalorder %s380, 3
        %s382 = scalar_select %p381, %s380, 3
        %s383 = smul.addr %s382, 8
        %s384 = scalar_lea.vmem %s0, %s383
        %s385 = smul.u32 2, %s29
        %s386 = smul.u32 2, %s29
        %s387 = smul.u32 2, %s29
        %v388 = vld [vmem:[%s384] sm:$0xff]
        %v389 = vld [vmem:[%s384 + $0x8] sm:$0xff]
        %v390 = vld [vmem:[%s1] sm:$0xff]
        %v391 = vld [vmem:[%s1 + $0x8] sm:$0xff]
        %v392 = vld [vmem:[%s1 + $0x10] sm:$0xff]
        %v393 = vld [vmem:[%s1 + $0x18] sm:$0xff]
        %v394 = vld [vmem:[%s2] sm:$0x1]
        %v396 = vlaneseq
        %v397 = vshrl.u32 %v396, 7
        %v398 = vsub.s32 0, %v397
        %v399 = vrot.slane %v394, %v398
        %vm401 = vcmask 261120
        %v403 = vsel %vm401, %v388, 0
        %v406 = vsel %vm401, %v389, 0
        %408 = vmatprep.subr.mxu0 0.0
        %409 = vmatpush1.msra.mxu0 %v390
        %410 = vmatprep.subr.mxu0 0.0
        %411 = vmatpush1.msra.mxu0 %v391
        %412 = vmatprep.subr.mxu0 0.0
        %413 = vmatpush1.msra.mxu0 %v392
        %414 = vmatprep.subr.mxu0 0.0
        %415 = vmatpush1.msra.mxu0 %v393
        %416 = vmatprep.subr.mxu0 0.0
        %417 = vmatpush1.msra.mxu0 0.0
        %418 = vmatprep.subr.mxu0 0.0
        %419 = vmatpush1.msra.mxu0 0.0
        %420 = vmatprep.subr.mxu0 0.0
        %421 = vmatpush1.msra.mxu0 0.0
        %422 = vmatprep.subr.mxu0 0.0
        %423 = vmatpush1.msra.mxu0 0.0
        %424 = vmatprep.subr.mxu0 0.0
        %425 = vmatpush1.msra.mxu0 0.0
        %426 = vmatprep.subr.mxu0 0.0
        %427 = vmatpush1.msra.mxu0 0.0
        %428 = vmatprep.subr.mxu0 0.0
        %429 = vmatpush1.msra.mxu0 0.0
        %430 = vmatprep.subr.mxu0 0.0
        %431 = vmatpush1.msra.mxu0 0.0
        %432 = vmatprep.subr.mxu0 0.0
        %433 = vmatpush1.msra.mxu0 0.0
        %434 = vmatprep.subr.mxu0 0.0
        %435 = vmatpush1.msra.mxu0 0.0
        %436 = vmatprep.subr.mxu0 0.0
        %437 = vmatpush1.msra.mxu0 0.0
        %438 = vmatprep.subr.mxu0 0.0
        %439 = vmatpush1.msra.mxu0 0.0
        %440 = vmatprep.subr.mxu0 0.0
        %441 = vmatpush1.msra.mxu0 0.0
        %442 = vmatprep.subr.mxu0 0.0
        %443 = vmatpush1.msra.mxu0 0.0
        %444 = vmatprep.subr.mxu0 0.0
        %445 = vmatpush1.msra.mxu0 0.0
        %446 = vmatprep.subr.mxu0 0.0
        %447 = vmatpush1.msra.mxu0 0.0
        %448 = vmatprep.subr.mxu0 0.0
        %449 = vmatpush1.msra.mxu0 0.0
        %450 = vmatprep.subr.mxu0 0.0
        %451 = vmatpush1.msra.mxu0 0.0
        %452 = vmatprep.subr.mxu0 0.0
        %453 = vmatpush1.msra.mxu0 0.0
        %454 = vmatprep.subr.mxu0 0.0
        %455 = vmatpush1.msra.mxu0 0.0
        %456 = vmatprep.subr.mxu0 0.0
        %457 = vmatpush1.msra.mxu0 0.0
        %458 = vmatprep.subr.mxu0 0.0
        %459 = vmatpush1.msra.mxu0 0.0
        %460 = vmatprep.subr.mxu0 0.0
        %461 = vmatpush1.msra.mxu0 0.0
        %462 = vmatprep.subr.mxu0 0.0
        %463 = vmatpush1.msra.mxu0 0.0
        %464 = vmatprep.subr.mxu0 0.0
        %465 = vmatpush1.msra.mxu0 0.0
        %466 = vmatprep.subr.mxu0 0.0
        %467 = vmatpush1.msra.mxu0 0.0
        %468 = vmatprep.subr.mxu0 0.0
        %469 = vmatpush1.msra.mxu0 0.0
        %470 = vmatprep.subr.mxu0 0.0
        %471 = vmatpush1.msra.mxu0 0.0
        %472 = vmatprep.mubr.f32.mxu0 0.0
        %473 = vmatmul.mubr.f32.gmra.mrb[0].mxu0 %v403
        %v474 = vpop.f32.mrb[0].mxu0
        %v475 = vadd.f32 %v399, %v474
        %v476 = vpop.f32.mrb[0].mxu0
        %477 = vmatprep.mubr.f32.mxu0 0.0
        %478 = vmatmul.mubr.f32.gmra.mrb[0].mxu0 %v406
        %v479 = vpop.f32.mrb[0].mxu0
        %v480 = vadd.f32 %v399, %v479
        %v481 = vpop.f32.mrb[0].mxu0
        %482 = vdwg.mxu0
        %484 = vrot.lane.b32.xlu0 %v475, 96
        %v485 = vpop.permute.xlu0 %484
        %vm486 = vcmask 64512
        %v487 = vsel %vm486, %v475, 0
        %v489 = vsel %vm486, %v485, 0
        %491 = vmatprep.subr.mxu0 0.0
        %492 = vmatpush1.xpose.msra.mxu0 %v489
        %493 = vmatprep.subr.mxu0 0.0
        %494 = vmatpush1.xpose.msra.mxu0 0.0
        %495 = vmatprep.subr.mxu0 0.0
        %496 = vmatpush1.xpose.msra.mxu0 0.0
        %497 = vmatprep.subr.mxu0 0.0
        %498 = vmatpush1.xpose.msra.mxu0 0.0
        %499 = vmatprep.subr.mxu0 0.0
        %500 = vmatpush1.xpose.msra.mxu0 0.0
        %501 = vmatprep.subr.mxu0 0.0
        %502 = vmatpush1.xpose.msra.mxu0 0.0
        %503 = vmatprep.subr.mxu0 0.0
        %504 = vmatpush1.xpose.msra.mxu0 0.0
        %505 = vmatprep.subr.mxu0 0.0
        %506 = vmatpush1.xpose.msra.mxu0 0.0
        %507 = vmatprep.subr.mxu0 0.0
        %508 = vmatpush1.xpose.msra.mxu0 0.0
        %509 = vmatprep.subr.mxu0 0.0
        %510 = vmatpush1.xpose.msra.mxu0 0.0
        %511 = vmatprep.subr.mxu0 0.0
        %512 = vmatpush1.xpose.msra.mxu0 0.0
        %513 = vmatprep.subr.mxu0 0.0
        %514 = vmatpush1.xpose.msra.mxu0 0.0
        %515 = vmatprep.subr.mxu0 0.0
        %516 = vmatpush1.xpose.msra.mxu0 0.0
        %517 = vmatprep.subr.mxu0 0.0
        %518 = vmatpush1.xpose.msra.mxu0 0.0
        %519 = vmatprep.subr.mxu0 0.0
        %520 = vmatpush1.xpose.msra.mxu0 0.0
        %521 = vmatprep.subr.mxu0 0.0
        %522 = vmatpush1.xpose.msra.mxu0 0.0
        %523 = vmatprep.subr.mxu0 0.0
        %524 = vmatpush1.xpose.msra.mxu0 0.0
        %525 = vmatprep.subr.mxu0 0.0
        %526 = vmatpush1.xpose.msra.mxu0 0.0
        %527 = vmatprep.subr.mxu0 0.0
        %528 = vmatpush1.xpose.msra.mxu0 0.0
        %529 = vmatprep.subr.mxu0 0.0
        %530 = vmatpush1.xpose.msra.mxu0 0.0
        %531 = vmatprep.subr.mxu0 0.0
        %532 = vmatpush1.xpose.msra.mxu0 0.0
        %533 = vmatprep.subr.mxu0 0.0
        %534 = vmatpush1.xpose.msra.mxu0 0.0
        %535 = vmatprep.subr.mxu0 0.0
        %536 = vmatpush1.xpose.msra.mxu0 0.0
        %537 = vmatprep.subr.mxu0 0.0
        %538 = vmatpush1.xpose.msra.mxu0 0.0
        %539 = vmatprep.subr.mxu0 0.0
        %540 = vmatpush1.xpose.msra.mxu0 0.0
        %541 = vmatprep.subr.mxu0 0.0
        %542 = vmatpush1.xpose.msra.mxu0 0.0
        %543 = vmatprep.subr.mxu0 0.0
        %544 = vmatpush1.xpose.msra.mxu0 0.0
        %545 = vmatprep.subr.mxu0 0.0
        %546 = vmatpush1.xpose.msra.mxu0 0.0
        %547 = vmatprep.subr.mxu0 0.0
        %548 = vmatpush1.xpose.msra.mxu0 0.0
        %549 = vmatprep.subr.mxu0 0.0
        %550 = vmatpush1.xpose.msra.mxu0 0.0
        %551 = vmatprep.subr.mxu0 0.0
        %552 = vmatpush1.xpose.msra.mxu0 0.0
        %553 = vmatprep.subr.mxu0 0.0
        %554 = vmatpush1.xpose.msra.mxu0 0.0
        %555 = vmatprep.mubr.f32.mxu0 0.0
        %556 = vmatmul.mubr.f32.gmra.mrb[0].mxu0 %v487
        %v557 = vpop.f32.mrb[0].mxu0
        %v558 = vadd.f32 0.0, %v557
        %v559 = vpop.f32.mrb[0].mxu0
        %560 = vdwg.mxu0
        %562 = vrot.lane.b32.xlu0 %v480, 96
        %v563 = vpop.permute.xlu0 %562
        %v564 = vsel %vm486, %v480, 0
        %v566 = vsel %vm486, %v563, 0
        %568 = vmatprep.subr.mxu0 0.0
        %569 = vmatpush1.xpose.msra.mxu0 %v566
        %570 = vmatprep.subr.mxu0 0.0
        %571 = vmatpush1.xpose.msra.mxu0 0.0
        %572 = vmatprep.subr.mxu0 0.0
        %573 = vmatpush1.xpose.msra.mxu0 0.0
        %574 = vmatprep.subr.mxu0 0.0
        %575 = vmatpush1.xpose.msra.mxu0 0.0
        %576 = vmatprep.subr.mxu0 0.0
        %577 = vmatpush1.xpose.msra.mxu0 0.0
        %578 = vmatprep.subr.mxu0 0.0
        %579 = vmatpush1.xpose.msra.mxu0 0.0
        %580 = vmatprep.subr.mxu0 0.0
        %581 = vmatpush1.xpose.msra.mxu0 0.0
        %582 = vmatprep.subr.mxu0 0.0
        %583 = vmatpush1.xpose.msra.mxu0 0.0
        %584 = vmatprep.subr.mxu0 0.0
        %585 = vmatpush1.xpose.msra.mxu0 0.0
        %586 = vmatprep.subr.mxu0 0.0
        %587 = vmatpush1.xpose.msra.mxu0 0.0
        %588 = vmatprep.subr.mxu0 0.0
        %589 = vmatpush1.xpose.msra.mxu0 0.0
        %590 = vmatprep.subr.mxu0 0.0
        %591 = vmatpush1.xpose.msra.mxu0 0.0
        %592 = vmatprep.subr.mxu0 0.0
        %593 = vmatpush1.xpose.msra.mxu0 0.0
        %594 = vmatprep.subr.mxu0 0.0
        %595 = vmatpush1.xpose.msra.mxu0 0.0
        %596 = vmatprep.subr.mxu0 0.0
        %597 = vmatpush1.xpose.msra.mxu0 0.0
        %598 = vmatprep.subr.mxu0 0.0
        %599 = vmatpush1.xpose.msra.mxu0 0.0
        %600 = vmatprep.subr.mxu0 0.0
        %601 = vmatpush1.xpose.msra.mxu0 0.0
        %602 = vmatprep.subr.mxu0 0.0
        %603 = vmatpush1.xpose.msra.mxu0 0.0
        %604 = vmatprep.subr.mxu0 0.0
        %605 = vmatpush1.xpose.msra.mxu0 0.0
        %606 = vmatprep.subr.mxu0 0.0
        %607 = vmatpush1.xpose.msra.mxu0 0.0
        %608 = vmatprep.subr.mxu0 0.0
        %609 = vmatpush1.xpose.msra.mxu0 0.0
        %610 = vmatprep.subr.mxu0 0.0
        %611 = vmatpush1.xpose.msra.mxu0 0.0
        %612 = vmatprep.subr.mxu0 0.0
        %613 = vmatpush1.xpose.msra.mxu0 0.0
        %614 = vmatprep.subr.mxu0 0.0
        %615 = vmatpush1.xpose.msra.mxu0 0.0
        %616 = vmatprep.subr.mxu0 0.0
        %617 = vmatpush1.xpose.msra.mxu0 0.0
        %618 = vmatprep.subr.mxu0 0.0
        %619 = vmatpush1.xpose.msra.mxu0 0.0
        %620 = vmatprep.subr.mxu0 0.0
        %621 = vmatpush1.xpose.msra.mxu0 0.0
        %622 = vmatprep.subr.mxu0 0.0
        %623 = vmatpush1.xpose.msra.mxu0 0.0
        %624 = vmatprep.subr.mxu0 0.0
        %625 = vmatpush1.xpose.msra.mxu0 0.0
        %626 = vmatprep.subr.mxu0 0.0
        %627 = vmatpush1.xpose.msra.mxu0 0.0
        %628 = vmatprep.subr.mxu0 0.0
        %629 = vmatpush1.xpose.msra.mxu0 0.0
        %630 = vmatprep.subr.mxu0 0.0
        %631 = vmatpush1.xpose.msra.mxu0 0.0
        %632 = vmatprep.mubr.f32.mxu0 0.0
        %633 = vmatmul.mubr.f32.gmra.mrb[0].mxu0 %v564
        %v634 = vpop.f32.mrb[0].mxu0
        %v635 = vadd.f32 0.0, %v634
        %v636 = vpop.f32.mrb[0].mxu0
        %637 = vdwg.mxu0
        %v638 = vsel %vm486, %v558, -inf
        %639 = vmax.xlane.f32.xlu0 %v638
        %v640 = vpop.xlane.xlu0 %639
        %v641 = vsel %vm486, %v635, -inf
        %642 = vmax.xlane.f32.xlu0 %v641
        %v643 = vpop.xlane.xlu0 %642
        %v644 = vsub.f32 %v558, %v640
        %v645 = vsub.f32 %v635, %v643
        %v646 = vmul.f32 %v644, 1.442695
        %v647 = vpow.pop %v646
        %v648 = vmul.f32 %v645, 1.442695
        %v649 = vpow.pop %v648
        %v650 = vsel %vm486, %v647, 0.0
        %651 = vadd.xlane.f32.xlu0 %v650
        %v652 = vpop.xlane.xlu0 %651
        %v653 = vsel %vm486, %v649, 0.0
        %654 = vadd.xlane.f32.xlu0 %v653
        %v655 = vpop.xlane.xlu0 %654
        %v656 = vrcp.pop %v652
        %v657 = vrcp.pop %v655
        %v658 = vmul.f32 %v647, %v656
        %v659 = vmul.f32 %v649, %v657
        %660 = vst.msk [vmem:[%s379] sm:$0xff] %vm486, %v658
        %661 = vst.msk [vmem:[%s379 + $0x20] sm:$0xff] %vm486, %v659
        %662 = vrot.lane.b32.xlu0 %v475, 64
        %v663 = vpop.permute.xlu0 %662
        %v666 = vsel %vm486, %v658, 0
        %668 = vmatprep.subr.mxu0 0.0
        %669 = vmatpush1.msra.mxu0 %v663
        %670 = vmatprep.subr.mxu0 0.0
        %671 = vmatpush1.msra.mxu0 0.0
        %672 = vmatprep.subr.mxu0 0.0
        %673 = vmatpush1.msra.mxu0 0.0
        %674 = vmatprep.subr.mxu0 0.0
        %675 = vmatpush1.msra.mxu0 0.0
        %676 = vmatprep.subr.mxu0 0.0
        %677 = vmatpush1.msra.mxu0 0.0
        %678 = vmatprep.subr.mxu0 0.0
        %679 = vmatpush1.msra.mxu0 0.0
        %680 = vmatprep.subr.mxu0 0.0
        %681 = vmatpush1.msra.mxu0 0.0
        %682 = vmatprep.subr.mxu0 0.0
        %683 = vmatpush1.msra.mxu0 0.0
        %684 = vmatprep.subr.mxu0 0.0
        %685 = vmatpush1.msra.mxu0 0.0
        %686 = vmatprep.subr.mxu0 0.0
        %687 = vmatpush1.msra.mxu0 0.0
        %688 = vmatprep.subr.mxu0 0.0
        %689 = vmatpush1.msra.mxu0 0.0
        %690 = vmatprep.subr.mxu0 0.0
        %691 = vmatpush1.msra.mxu0 0.0
        %692 = vmatprep.subr.mxu0 0.0
        %693 = vmatpush1.msra.mxu0 0.0
        %694 = vmatprep.subr.mxu0 0.0
        %695 = vmatpush1.msra.mxu0 0.0
        %696 = vmatprep.subr.mxu0 0.0
        %697 = vmatpush1.msra.mxu0 0.0
        %698 = vmatprep.subr.mxu0 0.0
        %699 = vmatpush1.msra.mxu0 0.0
        %700 = vmatprep.subr.mxu0 0.0
        %701 = vmatpush1.msra.mxu0 0.0
        %702 = vmatprep.subr.mxu0 0.0
        %703 = vmatpush1.msra.mxu0 0.0
        %704 = vmatprep.subr.mxu0 0.0
        %705 = vmatpush1.msra.mxu0 0.0
        %706 = vmatprep.subr.mxu0 0.0
        %707 = vmatpush1.msra.mxu0 0.0
        %708 = vmatprep.subr.mxu0 0.0
        %709 = vmatpush1.msra.mxu0 0.0
        %710 = vmatprep.subr.mxu0 0.0
        %711 = vmatpush1.msra.mxu0 0.0
        %712 = vmatprep.subr.mxu0 0.0
        %713 = vmatpush1.msra.mxu0 0.0
        %714 = vmatprep.subr.mxu0 0.0
        %715 = vmatpush1.msra.mxu0 0.0
        %716 = vmatprep.subr.mxu0 0.0
        %717 = vmatpush1.msra.mxu0 0.0
        %718 = vmatprep.subr.mxu0 0.0
        %719 = vmatpush1.msra.mxu0 0.0
        %720 = vmatprep.subr.mxu0 0.0
        %721 = vmatpush1.msra.mxu0 0.0
        %722 = vmatprep.subr.mxu0 0.0
        %723 = vmatpush1.msra.mxu0 0.0
        %724 = vmatprep.subr.mxu0 0.0
        %725 = vmatpush1.msra.mxu0 0.0
        %726 = vmatprep.subr.mxu0 0.0
        %727 = vmatpush1.msra.mxu0 0.0
        %728 = vmatprep.subr.mxu0 0.0
        %729 = vmatpush1.msra.mxu0 0.0
        %730 = vmatprep.subr.mxu0 0.0
        %731 = vmatpush1.msra.mxu0 0.0
        %732 = vmatprep.mubr.f32.mxu0 0.0
        %733 = vmatmul.mubr.f32.gmra.mrb[0].mxu0 %v666
        %v734 = vpop.f32.mrb[0].mxu0
        %v735 = vadd.f32 0.0, %v734
        %v736 = vpop.f32.mrb[0].mxu0
        %737 = vdwg.mxu0
        %738 = vrot.lane.b32.xlu0 %v480, 64
        %v739 = vpop.permute.xlu0 %738
        %v742 = vsel %vm486, %v659, 0
        %744 = vmatprep.subr.mxu0 0.0
        %745 = vmatpush1.msra.mxu0 %v739
        %746 = vmatprep.subr.mxu0 0.0
        %747 = vmatpush1.msra.mxu0 0.0
        %748 = vmatprep.subr.mxu0 0.0
        %749 = vmatpush1.msra.mxu0 0.0
        %750 = vmatprep.subr.mxu0 0.0
        %751 = vmatpush1.msra.mxu0 0.0
        %752 = vmatprep.subr.mxu0 0.0
        %753 = vmatpush1.msra.mxu0 0.0
        %754 = vmatprep.subr.mxu0 0.0
        %755 = vmatpush1.msra.mxu0 0.0
        %756 = vmatprep.subr.mxu0 0.0
        %757 = vmatpush1.msra.mxu0 0.0
        %758 = vmatprep.subr.mxu0 0.0
        %759 = vmatpush1.msra.mxu0 0.0
        %760 = vmatprep.subr.mxu0 0.0
        %761 = vmatpush1.msra.mxu0 0.0
        %762 = vmatprep.subr.mxu0 0.0
        %763 = vmatpush1.msra.mxu0 0.0
        %764 = vmatprep.subr.mxu0 0.0
        %765 = vmatpush1.msra.mxu0 0.0
        %766 = vmatprep.subr.mxu0 0.0
        %767 = vmatpush1.msra.mxu0 0.0
        %768 = vmatprep.subr.mxu0 0.0
        %769 = vmatpush1.msra.mxu0 0.0
        %770 = vmatprep.subr.mxu0 0.0
        %771 = vmatpush1.msra.mxu0 0.0
        %772 = vmatprep.subr.mxu0 0.0
        %773 = vmatpush1.msra.mxu0 0.0
        %774 = vmatprep.subr.mxu0 0.0
        %775 = vmatpush1.msra.mxu0 0.0
        %776 = vmatprep.subr.mxu0 0.0
        %777 = vmatpush1.msra.mxu0 0.0
        %778 = vmatprep.subr.mxu0 0.0
        %779 = vmatpush1.msra.mxu0 0.0
        %780 = vmatprep.subr.mxu0 0.0
        %781 = vmatpush1.msra.mxu0 0.0
        %782 = vmatprep.subr.mxu0 0.0
        %783 = vmatpush1.msra.mxu0 0.0
        %784 = vmatprep.subr.mxu0 0.0
        %785 = vmatpush1.msra.mxu0 0.0
        %786 = vmatprep.subr.mxu0 0.0
        %787 = vmatpush1.msra.mxu0 0.0
        %788 = vmatprep.subr.mxu0 0.0
        %789 = vmatpush1.msra.mxu0 0.0
        %790 = vmatprep.subr.mxu0 0.0
        %791 = vmatpush1.msra.mxu0 0.0
        %792 = vmatprep.subr.mxu0 0.0
        %793 = vmatpush1.msra.mxu0 0.0
        %794 = vmatprep.subr.mxu0 0.0
        %795 = vmatpush1.msra.mxu0 0.0
        %796 = vmatprep.subr.mxu0 0.0
        %797 = vmatpush1.msra.mxu0 0.0
        %798 = vmatprep.subr.mxu0 0.0
        %799 = vmatpush1.msra.mxu0 0.0
        %800 = vmatprep.subr.mxu0 0.0
        %801 = vmatpush1.msra.mxu0 0.0
        %802 = vmatprep.subr.mxu0 0.0
        %803 = vmatpush1.msra.mxu0 0.0
        %804 = vmatprep.subr.mxu0 0.0
        %805 = vmatpush1.msra.mxu0 0.0
        %806 = vmatprep.subr.mxu0 0.0
        %807 = vmatpush1.msra.mxu0 0.0
        %808 = vmatprep.mubr.f32.mxu0 0.0
        %809 = vmatmul.mubr.f32.gmra.mrb[0].mxu0 %v742
        %v810 = vpop.f32.mrb[0].mxu0
        %v811 = vadd.f32 0.0, %v810
        %v812 = vpop.f32.mrb[0].mxu0
        %813 = vdwg.mxu0
        %814 = vst.msk [vmem:[#allocation2] sm:$0xff] %vm486, %v735
        %815 = vst.msk [vmem:[#allocation2 + $0x8] sm:$0xff] %vm486, %v811
        %816 = vrot.lane.b32.xlu0 %v475, 120
        %v817 = vpop.permute.xlu0 %816
        %818 = vrot.lane.b32.xlu0 %v475, 88
        %v819 = vpop.permute.xlu0 %818
        %v820 = vsel %vm486, %v817, 0
        %v822 = vsel %vm486, %v819, 0
        %824 = vmatprep.subr.mxu0 0.0
        %825 = vmatpush1.xpose.msra.mxu0 %v822
        %826 = vmatprep.subr.mxu0 0.0
        %827 = vmatpush1.xpose.msra.mxu0 0.0
        %828 = vmatprep.subr.mxu0 0.0
        %829 = vmatpush1.xpose.msra.mxu0 0.0
        %830 = vmatprep.subr.mxu0 0.0
        %831 = vmatpush1.xpose.msra.mxu0 0.0
        %832 = vmatprep.subr.mxu0 0.0
        %833 = vmatpush1.xpose.msra.mxu0 0.0
        %834 = vmatprep.subr.mxu0 0.0
        %835 = vmatpush1.xpose.msra.mxu0 0.0
        %836 = vmatprep.subr.mxu0 0.0
        %837 = vmatpush1.xpose.msra.mxu0 0.0
        %838 = vmatprep.subr.mxu0 0.0
        %839 = vmatpush1.xpose.msra.mxu0 0.0
        %840 = vmatprep.subr.mxu0 0.0
        %841 = vmatpush1.xpose.msra.mxu0 0.0
        %842 = vmatprep.subr.mxu0 0.0
        %843 = vmatpush1.xpose.msra.mxu0 0.0
        %844 = vmatprep.subr.mxu0 0.0
        %845 = vmatpush1.xpose.msra.mxu0 0.0
        %846 = vmatprep.subr.mxu0 0.0
        %847 = vmatpush1.xpose.msra.mxu0 0.0
        %848 = vmatprep.subr.mxu0 0.0
        %849 = vmatpush1.xpose.msra.mxu0 0.0
        %850 = vmatprep.subr.mxu0 0.0
        %851 = vmatpush1.xpose.msra.mxu0 0.0
        %852 = vmatprep.subr.mxu0 0.0
        %853 = vmatpush1.xpose.msra.mxu0 0.0
        %854 = vmatprep.subr.mxu0 0.0
        %855 = vmatpush1.xpose.msra.mxu0 0.0
        %856 = vmatprep.subr.mxu0 0.0
        %857 = vmatpush1.xpose.msra.mxu0 0.0
        %858 = vmatprep.subr.mxu0 0.0
        %859 = vmatpush1.xpose.msra.mxu0 0.0
        %860 = vmatprep.subr.mxu0 0.0
        %861 = vmatpush1.xpose.msra.mxu0 0.0
        %862 = vmatprep.subr.mxu0 0.0
        %863 = vmatpush1.xpose.msra.mxu0 0.0
        %864 = vmatprep.subr.mxu0 0.0
        %865 = vmatpush1.xpose.msra.mxu0 0.0
        %866 = vmatprep.subr.mxu0 0.0
        %867 = vmatpush1.xpose.msra.mxu0 0.0
        %868 = vmatprep.subr.mxu0 0.0
        %869 = vmatpush1.xpose.msra.mxu0 0.0
        %870 = vmatprep.subr.mxu0 0.0
        %871 = vmatpush1.xpose.msra.mxu0 0.0
        %872 = vmatprep.subr.mxu0 0.0
        %873 = vmatpush1.xpose.msra.mxu0 0.0
        %874 = vmatprep.subr.mxu0 0.0
        %875 = vmatpush1.xpose.msra.mxu0 0.0
        %876 = vmatprep.subr.mxu0 0.0
        %877 = vmatpush1.xpose.msra.mxu0 0.0
        %878 = vmatprep.subr.mxu0 0.0
        %879 = vmatpush1.xpose.msra.mxu0 0.0
        %880 = vmatprep.subr.mxu0 0.0
        %881 = vmatpush1.xpose.msra.mxu0 0.0
        %882 = vmatprep.subr.mxu0 0.0
        %883 = vmatpush1.xpose.msra.mxu0 0.0
        %884 = vmatprep.subr.mxu0 0.0
        %885 = vmatpush1.xpose.msra.mxu0 0.0
        %886 = vmatprep.subr.mxu0 0.0
        %887 = vmatpush1.xpose.msra.mxu0 0.0
        %888 = vmatprep.mubr.f32.mxu0 0.0
        %889 = vmatmul.mubr.f32.gmra.mrb[0].mxu0 %v820
        %v890 = vpop.f32.mrb[0].mxu0
        %v891 = vadd.f32 0.0, %v890
        %v892 = vpop.f32.mrb[0].mxu0
        %893 = vdwg.mxu0
        %894 = vrot.lane.b32.xlu0 %v480, 120
        %v895 = vpop.permute.xlu0 %894
        %896 = vrot.lane.b32.xlu0 %v480, 88
        %v897 = vpop.permute.xlu0 %896
        %v898 = vsel %vm486, %v895, 0
        %v900 = vsel %vm486, %v897, 0
        %902 = vmatprep.subr.mxu0 0.0
        %903 = vmatpush1.xpose.msra.mxu0 %v900
        %904 = vmatprep.subr.mxu0 0.0
        %905 = vmatpush1.xpose.msra.mxu0 0.0
        %906 = vmatprep.subr.mxu0 0.0
        %907 = vmatpush1.xpose.msra.mxu0 0.0
        %908 = vmatprep.subr.mxu0 0.0
        %909 = vmatpush1.xpose.msra.mxu0 0.0
        %910 = vmatprep.subr.mxu0 0.0
        %911 = vmatpush1.xpose.msra.mxu0 0.0
        %912 = vmatprep.subr.mxu0 0.0
        %913 = vmatpush1.xpose.msra.mxu0 0.0
        %914 = vmatprep.subr.mxu0 0.0
        %915 = vmatpush1.xpose.msra.mxu0 0.0
        %916 = vmatprep.subr.mxu0 0.0
        %917 = vmatpush1.xpose.msra.mxu0 0.0
        %918 = vmatprep.subr.mxu0 0.0
        %919 = vmatpush1.xpose.msra.mxu0 0.0
        %920 = vmatprep.subr.mxu0 0.0
        %921 = vmatpush1.xpose.msra.mxu0 0.0
        %922 = vmatprep.subr.mxu0 0.0
        %923 = vmatpush1.xpose.msra.mxu0 0.0
        %924 = vmatprep.subr.mxu0 0.0
        %925 = vmatpush1.xpose.msra.mxu0 0.0
        %926 = vmatprep.subr.mxu0 0.0
        %927 = vmatpush1.xpose.msra.mxu0 0.0
        %928 = vmatprep.subr.mxu0 0.0
        %929 = vmatpush1.xpose.msra.mxu0 0.0
        %930 = vmatprep.subr.mxu0 0.0
        %931 = vmatpush1.xpose.msra.mxu0 0.0
        %932 = vmatprep.subr.mxu0 0.0
        %933 = vmatpush1.xpose.msra.mxu0 0.0
        %934 = vmatprep.subr.mxu0 0.0
        %935 = vmatpush1.xpose.msra.mxu0 0.0
        %936 = vmatprep.subr.mxu0 0.0
        %937 = vmatpush1.xpose.msra.mxu0 0.0
        %938 = vmatprep.subr.mxu0 0.0
        %939 = vmatpush1.xpose.msra.mxu0 0.0
        %940 = vmatprep.subr.mxu0 0.0
        %941 = vmatpush1.xpose.msra.mxu0 0.0
        %942 = vmatprep.subr.mxu0 0.0
        %943 = vmatpush1.xpose.msra.mxu0 0.0
        %944 = vmatprep.subr.mxu0 0.0
        %945 = vmatpush1.xpose.msra.mxu0 0.0
        %946 = vmatprep.subr.mxu0 0.0
        %947 = vmatpush1.xpose.msra.mxu0 0.0
        %948 = vmatprep.subr.mxu0 0.0
        %949 = vmatpush1.xpose.msra.mxu0 0.0
        %950 = vmatprep.subr.mxu0 0.0
        %951 = vmatpush1.xpose.msra.mxu0 0.0
        %952 = vmatprep.subr.mxu0 0.0
        %953 = vmatpush1.xpose.msra.mxu0 0.0
        %954 = vmatprep.subr.mxu0 0.0
        %955 = vmatpush1.xpose.msra.mxu0 0.0
        %956 = vmatprep.subr.mxu0 0.0
        %957 = vmatpush1.xpose.msra.mxu0 0.0
        %958 = vmatprep.subr.mxu0 0.0
        %959 = vmatpush1.xpose.msra.mxu0 0.0
        %960 = vmatprep.subr.mxu0 0.0
        %961 = vmatpush1.xpose.msra.mxu0 0.0
        %962 = vmatprep.subr.mxu0 0.0
        %963 = vmatpush1.xpose.msra.mxu0 0.0
        %964 = vmatprep.subr.mxu0 0.0
        %965 = vmatpush1.xpose.msra.mxu0 0.0
        %966 = vmatprep.mubr.f32.mxu0 0.0
        %967 = vmatmul.mubr.f32.gmra.mrb[0].mxu0 %v898
        %v968 = vpop.f32.mrb[0].mxu0
        %v969 = vadd.f32 0.0, %v968
        %v970 = vpop.f32.mrb[0].mxu0
        %971 = vdwg.mxu0
        %v972 = vsel %vm486, %v891, -inf
        %973 = vmax.xlane.f32.xlu0 %v972
        %v974 = vpop.xlane.xlu0 %973
        %v975 = vsel %vm486, %v969, -inf
        %976 = vmax.xlane.f32.xlu0 %v975
        %v977 = vpop.xlane.xlu0 %976
        %v978 = vsub.f32 %v891, %v974
        %v979 = vsub.f32 %v969, %v977
        %v980 = vmul.f32 %v978, 1.442695
        %v981 = vpow.pop %v980
        %v982 = vmul.f32 %v979, 1.442695
        %v983 = vpow.pop %v982
        %v984 = vsel %vm486, %v981, 0.0
        %985 = vadd.xlane.f32.xlu0 %v984
        %v986 = vpop.xlane.xlu0 %985
        %v987 = vsel %vm486, %v983, 0.0
        %988 = vadd.xlane.f32.xlu0 %v987
        %v989 = vpop.xlane.xlu0 %988
        %v990 = vrcp.pop %v986
        %v991 = vrcp.pop %v989
        %v992 = vmul.f32 %v981, %v990
        %v993 = vmul.f32 %v983, %v991
        %s994 = scalar_lea.vmem %s379, 8 [#allocation7]
        %995 = vst.msk [vmem:[%s994] sm:$0xff] %vm486, %v992
        %996 = vst.msk [vmem:[%s994 + $0x20] sm:$0xff] %vm486, %v993
        %997 = vrot.lane.b32.xlu0 %v475, 56
        %v998 = vpop.permute.xlu0 %997
        %v1001 = vsel %vm486, %v992, 0
        %1003 = vmatprep.subr.mxu0 0.0
        %1004 = vmatpush1.msra.mxu0 %v998
        %1005 = vmatprep.subr.mxu0 0.0
        %1006 = vmatpush1.msra.mxu0 0.0
        %1007 = vmatprep.subr.mxu0 0.0
        %1008 = vmatpush1.msra.mxu0 0.0
        %1009 = vmatprep.subr.mxu0 0.0
        %1010 = vmatpush1.msra.mxu0 0.0
        %1011 = vmatprep.subr.mxu0 0.0
        %1012 = vmatpush1.msra.mxu0 0.0
        %1013 = vmatprep.subr.mxu0 0.0
        %1014 = vmatpush1.msra.mxu0 0.0
        %1015 = vmatprep.subr.mxu0 0.0
        %1016 = vmatpush1.msra.mxu0 0.0
        %1017 = vmatprep.subr.mxu0 0.0
        %1018 = vmatpush1.msra.mxu0 0.0
        %1019 = vmatprep.subr.mxu0 0.0
        %1020 = vmatpush1.msra.mxu0 0.0
        %1021 = vmatprep.subr.mxu0 0.0
        %1022 = vmatpush1.msra.mxu0 0.0
        %1023 = vmatprep.subr.mxu0 0.0
        %1024 = vmatpush1.msra.mxu0 0.0
        %1025 = vmatprep.subr.mxu0 0.0
        %1026 = vmatpush1.msra.mxu0 0.0
        %1027 = vmatprep.subr.mxu0 0.0
        %1028 = vmatpush1.msra.mxu0 0.0
        %1029 = vmatprep.subr.mxu0 0.0
        %1030 = vmatpush1.msra.mxu0 0.0
        %1031 = vmatprep.subr.mxu0 0.0
        %1032 = vmatpush1.msra.mxu0 0.0
        %1033 = vmatprep.subr.mxu0 0.0
        %1034 = vmatpush1.msra.mxu0 0.0
        %1035 = vmatprep.subr.mxu0 0.0
        %1036 = vmatpush1.msra.mxu0 0.0
        %1037 = vmatprep.subr.mxu0 0.0
        %1038 = vmatpush1.msra.mxu0 0.0
        %1039 = vmatprep.subr.mxu0 0.0
        %1040 = vmatpush1.msra.mxu0 0.0
        %1041 = vmatprep.subr.mxu0 0.0
        %1042 = vmatpush1.msra.mxu0 0.0
        %1043 = vmatprep.subr.mxu0 0.0
        %1044 = vmatpush1.msra.mxu0 0.0
        %1045 = vmatprep.subr.mxu0 0.0
        %1046 = vmatpush1.msra.mxu0 0.0
        %1047 = vmatprep.subr.mxu0 0.0
        %1048 = vmatpush1.msra.mxu0 0.0
        %1049 = vmatprep.subr.mxu0 0.0
        %1050 = vmatpush1.msra.mxu0 0.0
        %1051 = vmatprep.subr.mxu0 0.0
        %1052 = vmatpush1.msra.mxu0 0.0
        %1053 = vmatprep.subr.mxu0 0.0
        %1054 = vmatpush1.msra.mxu0 0.0
        %1055 = vmatprep.subr.mxu0 0.0
        %1056 = vmatpush1.msra.mxu0 0.0
        %1057 = vmatprep.subr.mxu0 0.0
        %1058 = vmatpush1.msra.mxu0 0.0
        %1059 = vmatprep.subr.mxu0 0.0
        %1060 = vmatpush1.msra.mxu0 0.0
        %1061 = vmatprep.subr.mxu0 0.0
        %1062 = vmatpush1.msra.mxu0 0.0
        %1063 = vmatprep.subr.mxu0 0.0
        %1064 = vmatpush1.msra.mxu0 0.0
        %1065 = vmatprep.subr.mxu0 0.0
        %1066 = vmatpush1.msra.mxu0 0.0
        %1067 = vmatprep.mubr.f32.mxu0 0.0
        %1068 = vmatmul.mubr.f32.gmra.mrb[0].mxu0 %v1001
        %v1069 = vpop.f32.mrb[0].mxu0
        %v1070 = vadd.f32 0.0, %v1069
        %v1071 = vpop.f32.mrb[0].mxu0
        %1072 = vdwg.mxu0
        %1073 = vrot.lane.b32.xlu0 %v480, 56
        %v1074 = vpop.permute.xlu0 %1073
        %v1077 = vsel %vm486, %v993, 0
        %1079 = vmatprep.subr.mxu0 0.0
        %1080 = vmatpush1.msra.mxu0 %v1074
        %1081 = vmatprep.subr.mxu0 0.0
        %1082 = vmatpush1.msra.mxu0 0.0
        %1083 = vmatprep.subr.mxu0 0.0
        %1084 = vmatpush1.msra.mxu0 0.0
        %1085 = vmatprep.subr.mxu0 0.0
        %1086 = vmatpush1.msra.mxu0 0.0
        %1087 = vmatprep.subr.mxu0 0.0
        %1088 = vmatpush1.msra.mxu0 0.0
        %1089 = vmatprep.subr.mxu0 0.0
        %1090 = vmatpush1.msra.mxu0 0.0
        %1091 = vmatprep.subr.mxu0 0.0
        %1092 = vmatpush1.msra.mxu0 0.0
        %1093 = vmatprep.subr.mxu0 0.0
        %1094 = vmatpush1.msra.mxu0 0.0
        %1095 = vmatprep.subr.mxu0 0.0
        %1096 = vmatpush1.msra.mxu0 0.0
        %1097 = vmatprep.subr.mxu0 0.0
        %1098 = vmatpush1.msra.mxu0 0.0
        %1099 = vmatprep.subr.mxu0 0.0
        %1100 = vmatpush1.msra.mxu0 0.0
        %1101 = vmatprep.subr.mxu0 0.0
        %1102 = vmatpush1.msra.mxu0 0.0
        %1103 = vmatprep.subr.mxu0 0.0
        %1104 = vmatpush1.msra.mxu0 0.0
        %1105 = vmatprep.subr.mxu0 0.0
        %1106 = vmatpush1.msra.mxu0 0.0
        %1107 = vmatprep.subr.mxu0 0.0
        %1108 = vmatpush1.msra.mxu0 0.0
        %1109 = vmatprep.subr.mxu0 0.0
        %1110 = vmatpush1.msra.mxu0 0.0
        %1111 = vmatprep.subr.mxu0 0.0
        %1112 = vmatpush1.msra.mxu0 0.0
        %1113 = vmatprep.subr.mxu0 0.0
        %1114 = vmatpush1.msra.mxu0 0.0
        %1115 = vmatprep.subr.mxu0 0.0
        %1116 = vmatpush1.msra.mxu0 0.0
        %1117 = vmatprep.subr.mxu0 0.0
        %1118 = vmatpush1.msra.mxu0 0.0
        %1119 = vmatprep.subr.mxu0 0.0
        %1120 = vmatpush1.msra.mxu0 0.0
        %1121 = vmatprep.subr.mxu0 0.0
        %1122 = vmatpush1.msra.mxu0 0.0
        %1123 = vmatprep.subr.mxu0 0.0
        %1124 = vmatpush1.msra.mxu0 0.0
        %1125 = vmatprep.subr.mxu0 0.0
        %1126 = vmatpush1.msra.mxu0 0.0
        %1127 = vmatprep.subr.mxu0 0.0
        %1128 = vmatpush1.msra.mxu0 0.0
        %1129 = vmatprep.subr.mxu0 0.0
        %1130 = vmatpush1.msra.mxu0 0.0
        %1131 = vmatprep.subr.mxu0 0.0
        %1132 = vmatpush1.msra.mxu0 0.0
        %1133 = vmatprep.subr.mxu0 0.0
        %1134 = vmatpush1.msra.mxu0 0.0
        %1135 = vmatprep.subr.mxu0 0.0
        %1136 = vmatpush1.msra.mxu0 0.0
        %1137 = vmatprep.subr.mxu0 0.0
        %1138 = vmatpush1.msra.mxu0 0.0
        %1139 = vmatprep.subr.mxu0 0.0
        %1140 = vmatpush1.msra.mxu0 0.0
        %1141 = vmatprep.subr.mxu0 0.0
        %1142 = vmatpush1.msra.mxu0 0.0
        %1143 = vmatprep.mubr.f32.mxu0 0.0
        %1144 = vmatmul.mubr.f32.gmra.mrb[0].mxu0 %v1077
        %v1145 = vpop.f32.mrb[0].mxu0
        %v1146 = vadd.f32 0.0, %v1145
        %v1147 = vpop.f32.mrb[0].mxu0
        %1148 = vdwg.mxu0
        %1151 = vrot.lane.b32.xlu0 %v1070, 8
        %v1152 = vpop.permute.xlu0 %1151
        %1153 = vrot.lane.b32.xlu0 %v1146, 8
        %v1154 = vpop.permute.xlu0 %1153
        %vm1157 = vcmask 130112
        %1158 = vst.msk [vmem:[#allocation2] sm:$0xff] %vm1157, %v1152
        %1159 = vst.msk [vmem:[#allocation2 + $0x8] sm:$0xff] %vm1157, %v1154
        %1160 = vrot.lane.b32.xlu0 %v475, 112
        %v1161 = vpop.permute.xlu0 %1160
        %1162 = vrot.lane.b32.xlu0 %v475, 80
        %v1163 = vpop.permute.xlu0 %1162
        %v1164 = vsel %vm486, %v1161, 0
        %v1166 = vsel %vm486, %v1163, 0
        %1168 = vmatprep.subr.mxu0 0.0
        %1169 = vmatpush1.xpose.msra.mxu0 %v1166
        %1170 = vmatprep.subr.mxu0 0.0
        %1171 = vmatpush1.xpose.msra.mxu0 0.0
        %1172 = vmatprep.subr.mxu0 0.0
        %1173 = vmatpush1.xpose.msra.mxu0 0.0
        %1174 = vmatprep.subr.mxu0 0.0
        %1175 = vmatpush1.xpose.msra.mxu0 0.0
        %1176 = vmatprep.subr.mxu0 0.0
        %1177 = vmatpush1.xpose.msra.mxu0 0.0
        %1178 = vmatprep.subr.mxu0 0.0
        %1179 = vmatpush1.xpose.msra.mxu0 0.0
        %1180 = vmatprep.subr.mxu0 0.0
        %1181 = vmatpush1.xpose.msra.mxu0 0.0
        %1182 = vmatprep.subr.mxu0 0.0
        %1183 = vmatpush1.xpose.msra.mxu0 0.0
        %1184 = vmatprep.subr.mxu0 0.0
        %1185 = vmatpush1.xpose.msra.mxu0 0.0
        %1186 = vmatprep.subr.mxu0 0.0
        %1187 = vmatpush1.xpose.msra.mxu0 0.0
        %1188 = vmatprep.subr.mxu0 0.0
        %1189 = vmatpush1.xpose.msra.mxu0 0.0
        %1190 = vmatprep.subr.mxu0 0.0
        %1191 = vmatpush1.xpose.msra.mxu0 0.0
        %1192 = vmatprep.subr.mxu0 0.0
        %1193 = vmatpush1.xpose.msra.mxu0 0.0
        %1194 = vmatprep.subr.mxu0 0.0
        %1195 = vmatpush1.xpose.msra.mxu0 0.0
        %1196 = vmatprep.subr.mxu0 0.0
        %1197 = vmatpush1.xpose.msra.mxu0 0.0
        %1198 = vmatprep.subr.mxu0 0.0
        %1199 = vmatpush1.xpose.msra.mxu0 0.0
        %1200 = vmatprep.subr.mxu0 0.0
        %1201 = vmatpush1.xpose.msra.mxu0 0.0
        %1202 = vmatprep.subr.mxu0 0.0
        %1203 = vmatpush1.xpose.msra.mxu0 0.0
        %1204 = vmatprep.subr.mxu0 0.0
        %1205 = vmatpush1.xpose.msra.mxu0 0.0
        %1206 = vmatprep.subr.mxu0 0.0
        %1207 = vmatpush1.xpose.msra.mxu0 0.0
        %1208 = vmatprep.subr.mxu0 0.0
        %1209 = vmatpush1.xpose.msra.mxu0 0.0
        %1210 = vmatprep.subr.mxu0 0.0
        %1211 = vmatpush1.xpose.msra.mxu0 0.0
        %1212 = vmatprep.subr.mxu0 0.0
        %1213 = vmatpush1.xpose.msra.mxu0 0.0
        %1214 = vmatprep.subr.mxu0 0.0
        %1215 = vmatpush1.xpose.msra.mxu0 0.0
        %1216 = vmatprep.subr.mxu0 0.0
        %1217 = vmatpush1.xpose.msra.mxu0 0.0
        %1218 = vmatprep.subr.mxu0 0.0
        %1219 = vmatpush1.xpose.msra.mxu0 0.0
        %1220 = vmatprep.subr.mxu0 0.0
        %1221 = vmatpush1.xpose.msra.mxu0 0.0
        %1222 = vmatprep.subr.mxu0 0.0
        %1223 = vmatpush1.xpose.msra.mxu0 0.0
        %1224 = vmatprep.subr.mxu0 0.0
        %1225 = vmatpush1.xpose.msra.mxu0 0.0
        %1226 = vmatprep.subr.mxu0 0.0
        %1227 = vmatpush1.xpose.msra.mxu0 0.0
        %1228 = vmatprep.subr.mxu0 0.0
        %1229 = vmatpush1.xpose.msra.mxu0 0.0
        %1230 = vmatprep.subr.mxu0 0.0
        %1231 = vmatpush1.xpose.msra.mxu0 0.0
        %1232 = vmatprep.mubr.f32.mxu0 0.0
        %1233 = vmatmul.mubr.f32.gmra.mrb[0].mxu0 %v1164
        %v1234 = vpop.f32.mrb[0].mxu0
        %v1235 = vadd.f32 0.0, %v1234
        %v1236 = vpop.f32.mrb[0].mxu0
        %1237 = vdwg.mxu0
        %1238 = vrot.lane.b32.xlu0 %v480, 112
        %v1239 = vpop.permute.xlu0 %1238
        %1240 = vrot.lane.b32.xlu0 %v480, 80
        %v1241 = vpop.permute.xlu0 %1240
        %v1242 = vsel %vm486, %v1239, 0
        %v1244 = vsel %vm486, %v1241, 0
        %1246 = vmatprep.subr.mxu0 0.0
        %1247 = vmatpush1.xpose.msra.mxu0 %v1244
        %1248 = vmatprep.subr.mxu0 0.0
        %1249 = vmatpush1.xpose.msra.mxu0 0.0
        %1250 = vmatprep.subr.mxu0 0.0
        %1251 = vmatpush1.xpose.msra.mxu0 0.0
        %1252 = vmatprep.subr.mxu0 0.0
        %1253 = vmatpush1.xpose.msra.mxu0 0.0
        %1254 = vmatprep.subr.mxu0 0.0
        %1255 = vmatpush1.xpose.msra.mxu0 0.0
        %1256 = vmatprep.subr.mxu0 0.0
        %1257 = vmatpush1.xpose.msra.mxu0 0.0
        %1258 = vmatprep.subr.mxu0 0.0
        %1259 = vmatpush1.xpose.msra.mxu0 0.0
        %1260 = vmatprep.subr.mxu0 0.0
        %1261 = vmatpush1.xpose.msra.mxu0 0.0
        %1262 = vmatprep.subr.mxu0 0.0
        %1263 = vmatpush1.xpose.msra.mxu0 0.0
        %1264 = vmatprep.subr.mxu0 0.0
        %1265 = vmatpush1.xpose.msra.mxu0 0.0
        %1266 = vmatprep.subr.mxu0 0.0
        %1267 = vmatpush1.xpose.msra.mxu0 0.0
        %1268 = vmatprep.subr.mxu0 0.0
        %1269 = vmatpush1.xpose.msra.mxu0 0.0
        %1270 = vmatprep.subr.mxu0 0.0
        %1271 = vmatpush1.xpose.msra.mxu0 0.0
        %1272 = vmatprep.subr.mxu0 0.0
        %1273 = vmatpush1.xpose.msra.mxu0 0.0
        %1274 = vmatprep.subr.mxu0 0.0
        %1275 = vmatpush1.xpose.msra.mxu0 0.0
        %1276 = vmatprep.subr.mxu0 0.0
        %1277 = vmatpush1.xpose.msra.mxu0 0.0
        %1278 = vmatprep.subr.mxu0 0.0
        %1279 = vmatpush1.xpose.msra.mxu0 0.0
        %1280 = vmatprep.subr.mxu0 0.0
        %1281 = vmatpush1.xpose.msra.mxu0 0.0
        %1282 = vmatprep.subr.mxu0 0.0
        %1283 = vmatpush1.xpose.msra.mxu0 0.0
        %1284 = vmatprep.subr.mxu0 0.0
        %1285 = vmatpush1.xpose.msra.mxu0 0.0
        %1286 = vmatprep.subr.mxu0 0.0
        %1287 = vmatpush1.xpose.msra.mxu0 0.0
        %1288 = vmatprep.subr.mxu0 0.0
        %1289 = vmatpush1.xpose.msra.mxu0 0.0
        %1290 = vmatprep.subr.mxu0 0.0
        %1291 = vmatpush1.xpose.msra.mxu0 0.0
        %1292 = vmatprep.subr.mxu0 0.0
        %1293 = vmatpush1.xpose.msra.mxu0 0.0
        %1294 = vmatprep.subr.mxu0 0.0
        %1295 = vmatpush1.xpose.msra.mxu0 0.0
        %1296 = vmatprep.subr.mxu0 0.0
        %1297 = vmatpush1.xpose.msra.mxu0 0.0
        %1298 = vmatprep.subr.mxu0 0.0
        %1299 = vmatpush1.xpose.msra.mxu0 0.0
        %1300 = vmatprep.subr.mxu0 0.0
        %1301 = vmatpush1.xpose.msra.mxu0 0.0
        %1302 = vmatprep.subr.mxu0 0.0
        %1303 = vmatpush1.xpose.msra.mxu0 0.0
        %1304 = vmatprep.subr.mxu0 0.0
        %1305 = vmatpush1.xpose.msra.mxu0 0.0
        %1306 = vmatprep.subr.mxu0 0.0
        %1307 = vmatpush1.xpose.msra.mxu0 0.0
        %1308 = vmatprep.subr.mxu0 0.0
        %1309 = vmatpush1.xpose.msra.mxu0 0.0
        %1310 = vmatprep.mubr.f32.mxu0 0.0
        %1311 = vmatmul.mubr.f32.gmra.mrb[0].mxu0 %v1242
        %v1312 = vpop.f32.mrb[0].mxu0
        %v1313 = vadd.f32 0.0, %v1312
        %v1314 = vpop.f32.mrb[0].mxu0
        %1315 = vdwg.mxu0
        %v1316 = vsel %vm486, %v1235, -inf
        %1317 = vmax.xlane.f32.xlu0 %v1316
        %v1318 = vpop.xlane.xlu0 %1317
        %v1319 = vsel %vm486, %v1313, -inf
        %1320 = vmax.xlane.f32.xlu0 %v1319
        %v1321 = vpop.xlane.xlu0 %1320
        %v1322 = vsub.f32 %v1235, %v1318
        %v1323 = vsub.f32 %v1313, %v1321
        %v1324 = vmul.f32 %v1322, 1.442695
        %v1325 = vpow.pop %v1324
        %v1326 = vmul.f32 %v1323, 1.442695
        %v1327 = vpow.pop %v1326
        %v1328 = vsel %vm486, %v1325, 0.0
        %1329 = vadd.xlane.f32.xlu0 %v1328
        %v1330 = vpop.xlane.xlu0 %1329
        %v1331 = vsel %vm486, %v1327, 0.0
        %1332 = vadd.xlane.f32.xlu0 %v1331
        %v1333 = vpop.xlane.xlu0 %1332
        %v1334 = vrcp.pop %v1330
        %v1335 = vrcp.pop %v1333
        %v1336 = vmul.f32 %v1325, %v1334
        %v1337 = vmul.f32 %v1327, %v1335
        %s1338 = scalar_lea.vmem %s379, 16 [#allocation7]
        %1339 = vst.msk [vmem:[%s1338] sm:$0xff] %vm486, %v1336
        %1340 = vst.msk [vmem:[%s1338 + $0x20] sm:$0xff] %vm486, %v1337
        %1341 = vrot.lane.b32.xlu0 %v475, 48
        %v1342 = vpop.permute.xlu0 %1341
        %v1345 = vsel %vm486, %v1336, 0
        %1347 = vmatprep.subr.mxu0 0.0
        %1348 = vmatpush1.msra.mxu0 %v1342
        %1349 = vmatprep.subr.mxu0 0.0
        %1350 = vmatpush1.msra.mxu0 0.0
        %1351 = vmatprep.subr.mxu0 0.0
        %1352 = vmatpush1.msra.mxu0 0.0
        %1353 = vmatprep.subr.mxu0 0.0
        %1354 = vmatpush1.msra.mxu0 0.0
        %1355 = vmatprep.subr.mxu0 0.0
        %1356 = vmatpush1.msra.mxu0 0.0
        %1357 = vmatprep.subr.mxu0 0.0
        %1358 = vmatpush1.msra.mxu0 0.0
        %1359 = vmatprep.subr.mxu0 0.0
        %1360 = vmatpush1.msra.mxu0 0.0
        %1361 = vmatprep.subr.mxu0 0.0
        %1362 = vmatpush1.msra.mxu0 0.0
        %1363 = vmatprep.subr.mxu0 0.0
        %1364 = vmatpush1.msra.mxu0 0.0
        %1365 = vmatprep.subr.mxu0 0.0
        %1366 = vmatpush1.msra.mxu0 0.0
        %1367 = vmatprep.subr.mxu0 0.0
        %1368 = vmatpush1.msra.mxu0 0.0
        %1369 = vmatprep.subr.mxu0 0.0
        %1370 = vmatpush1.msra.mxu0 0.0
        %1371 = vmatprep.subr.mxu0 0.0
        %1372 = vmatpush1.msra.mxu0 0.0
        %1373 = vmatprep.subr.mxu0 0.0
        %1374 = vmatpush1.msra.mxu0 0.0
        %1375 = vmatprep.subr.mxu0 0.0
        %1376 = vmatpush1.msra.mxu0 0.0
        %1377 = vmatprep.subr.mxu0 0.0
        %1378 = vmatpush1.msra.mxu0 0.0
        %1379 = vmatprep.subr.mxu0 0.0
        %1380 = vmatpush1.msra.mxu0 0.0
        %1381 = vmatprep.subr.mxu0 0.0
        %1382 = vmatpush1.msra.mxu0 0.0
        %1383 = vmatprep.subr.mxu0 0.0
        %1384 = vmatpush1.msra.mxu0 0.0
        %1385 = vmatprep.subr.mxu0 0.0
        %1386 = vmatpush1.msra.mxu0 0.0
        %1387 = vmatprep.subr.mxu0 0.0
        %1388 = vmatpush1.msra.mxu0 0.0
        %1389 = vmatprep.subr.mxu0 0.0
        %1390 = vmatpush1.msra.mxu0 0.0
        %1391 = vmatprep.subr.mxu0 0.0
        %1392 = vmatpush1.msra.mxu0 0.0
        %1393 = vmatprep.subr.mxu0 0.0
        %1394 = vmatpush1.msra.mxu0 0.0
        %1395 = vmatprep.subr.mxu0 0.0
        %1396 = vmatpush1.msra.mxu0 0.0
        %1397 = vmatprep.subr.mxu0 0.0
        %1398 = vmatpush1.msra.mxu0 0.0
        %1399 = vmatprep.subr.mxu0 0.0
        %1400 = vmatpush1.msra.mxu0 0.0
        %1401 = vmatprep.subr.mxu0 0.0
        %1402 = vmatpush1.msra.mxu0 0.0
        %1403 = vmatprep.subr.mxu0 0.0
        %1404 = vmatpush1.msra.mxu0 0.0
        %1405 = vmatprep.subr.mxu0 0.0
        %1406 = vmatpush1.msra.mxu0 0.0
        %1407 = vmatprep.subr.mxu0 0.0
        %1408 = vmatpush1.msra.mxu0 0.0
        %1409 = vmatprep.subr.mxu0 0.0
        %1410 = vmatpush1.msra.mxu0 0.0
        %1411 = vmatprep.mubr.f32.mxu0 0.0
        %1412 = vmatmul.mubr.f32.gmra.mrb[0].mxu0 %v1345
        %v1413 = vpop.f32.mrb[0].mxu0
        %v1414 = vadd.f32 0.0, %v1413
        %v1415 = vpop.f32.mrb[0].mxu0
        %1416 = vdwg.mxu0
        %1417 = vrot.lane.b32.xlu0 %v480, 48
        %v1418 = vpop.permute.xlu0 %1417
        %v1421 = vsel %vm486, %v1337, 0
        %1423 = vmatprep.subr.mxu0 0.0
        %1424 = vmatpush1.msra.mxu0 %v1418
        %1425 = vmatprep.subr.mxu0 0.0
        %1426 = vmatpush1.msra.mxu0 0.0
        %1427 = vmatprep.subr.mxu0 0.0
        %1428 = vmatpush1.msra.mxu0 0.0
        %1429 = vmatprep.subr.mxu0 0.0
        %1430 = vmatpush1.msra.mxu0 0.0
        %1431 = vmatprep.subr.mxu0 0.0
        %1432 = vmatpush1.msra.mxu0 0.0
        %1433 = vmatprep.subr.mxu0 0.0
        %1434 = vmatpush1.msra.mxu0 0.0
        %1435 = vmatprep.subr.mxu0 0.0
        %1436 = vmatpush1.msra.mxu0 0.0
        %1437 = vmatprep.subr.mxu0 0.0
        %1438 = vmatpush1.msra.mxu0 0.0
        %1439 = vmatprep.subr.mxu0 0.0
        %1440 = vmatpush1.msra.mxu0 0.0
        %1441 = vmatprep.subr.mxu0 0.0
        %1442 = vmatpush1.msra.mxu0 0.0
        %1443 = vmatprep.subr.mxu0 0.0
        %1444 = vmatpush1.msra.mxu0 0.0
        %1445 = vmatprep.subr.mxu0 0.0
        %1446 = vmatpush1.msra.mxu0 0.0
        %1447 = vmatprep.subr.mxu0 0.0
        %1448 = vmatpush1.msra.mxu0 0.0
        %1449 = vmatprep.subr.mxu0 0.0
        %1450 = vmatpush1.msra.mxu0 0.0
        %1451 = vmatprep.subr.mxu0 0.0
        %1452 = vmatpush1.msra.mxu0 0.0
        %1453 = vmatprep.subr.mxu0 0.0
        %1454 = vmatpush1.msra.mxu0 0.0
        %1455 = vmatprep.subr.mxu0 0.0
        %1456 = vmatpush1.msra.mxu0 0.0
        %1457 = vmatprep.subr.mxu0 0.0
        %1458 = vmatpush1.msra.mxu0 0.0
        %1459 = vmatprep.subr.mxu0 0.0
        %1460 = vmatpush1.msra.mxu0 0.0
        %1461 = vmatprep.subr.mxu0 0.0
        %1462 = vmatpush1.msra.mxu0 0.0
        %1463 = vmatprep.subr.mxu0 0.0
        %1464 = vmatpush1.msra.mxu0 0.0
        %1465 = vmatprep.subr.mxu0 0.0
        %1466 = vmatpush1.msra.mxu0 0.0
        %1467 = vmatprep.subr.mxu0 0.0
        %1468 = vmatpush1.msra.mxu0 0.0
        %1469 = vmatprep.subr.mxu0 0.0
        %1470 = vmatpush1.msra.mxu0 0.0
        %1471 = vmatprep.subr.mxu0 0.0
        %1472 = vmatpush1.msra.mxu0 0.0
        %1473 = vmatprep.subr.mxu0 0.0
        %1474 = vmatpush1.msra.mxu0 0.0
        %1475 = vmatprep.subr.mxu0 0.0
        %1476 = vmatpush1.msra.mxu0 0.0
        %1477 = vmatprep.subr.mxu0 0.0
        %1478 = vmatpush1.msra.mxu0 0.0
        %1479 = vmatprep.subr.mxu0 0.0
        %1480 = vmatpush1.msra.mxu0 0.0
        %1481 = vmatprep.subr.mxu0 0.0
        %1482 = vmatpush1.msra.mxu0 0.0
        %1483 = vmatprep.subr.mxu0 0.0
        %1484 = vmatpush1.msra.mxu0 0.0
        %1485 = vmatprep.subr.mxu0 0.0
        %1486 = vmatpush1.msra.mxu0 0.0
        %1487 = vmatprep.mubr.f32.mxu0 0.0
        %1488 = vmatmul.mubr.f32.gmra.mrb[0].mxu0 %v1421
        %v1489 = vpop.f32.mrb[0].mxu0
        %v1490 = vadd.f32 0.0, %v1489
        %v1491 = vpop.f32.mrb[0].mxu0
        %1492 = vdwg.mxu0
        %1495 = vrot.lane.b32.xlu0 %v1414, 16
        %v1496 = vpop.permute.xlu0 %1495
        %1497 = vrot.lane.b32.xlu0 %v1490, 16
        %v1498 = vpop.permute.xlu0 %1497
        %vm1501 = vcmask 195712
        %1502 = vst.msk [vmem:[#allocation2] sm:$0xff] %vm1501, %v1496
        %1503 = vst.msk [vmem:[#allocation2 + $0x8] sm:$0xff] %vm1501, %v1498
        %1504 = vrot.lane.b32.xlu0 %v475, 104
        %v1505 = vpop.permute.xlu0 %1504
        %1506 = vrot.lane.b32.xlu0 %v475, 72
        %v1507 = vpop.permute.xlu0 %1506
        %v1508 = vsel %vm486, %v1505, 0
        %v1510 = vsel %vm486, %v1507, 0
        %1512 = vmatprep.subr.mxu0 0.0
        %1513 = vmatpush1.xpose.msra.mxu0 %v1510
        %1514 = vmatprep.subr.mxu0 0.0
        %1515 = vmatpush1.xpose.msra.mxu0 0.0
        %1516 = vmatprep.subr.mxu0 0.0
        %1517 = vmatpush1.xpose.msra.mxu0 0.0
        %1518 = vmatprep.subr.mxu0 0.0
        %1519 = vmatpush1.xpose.msra.mxu0 0.0
        %1520 = vmatprep.subr.mxu0 0.0
        %1521 = vmatpush1.xpose.msra.mxu0 0.0
        %1522 = vmatprep.subr.mxu0 0.0
        %1523 = vmatpush1.xpose.msra.mxu0 0.0
        %1524 = vmatprep.subr.mxu0 0.0
        %1525 = vmatpush1.xpose.msra.mxu0 0.0
        %1526 = vmatprep.subr.mxu0 0.0
        %1527 = vmatpush1.xpose.msra.mxu0 0.0
        %1528 = vmatprep.subr.mxu0 0.0
        %1529 = vmatpush1.xpose.msra.mxu0 0.0
        %1530 = vmatprep.subr.mxu0 0.0
        %1531 = vmatpush1.xpose.msra.mxu0 0.0
        %1532 = vmatprep.subr.mxu0 0.0
        %1533 = vmatpush1.xpose.msra.mxu0 0.0
        %1534 = vmatprep.subr.mxu0 0.0
        %1535 = vmatpush1.xpose.msra.mxu0 0.0
        %1536 = vmatprep.subr.mxu0 0.0
        %1537 = vmatpush1.xpose.msra.mxu0 0.0
        %1538 = vmatprep.subr.mxu0 0.0
        %1539 = vmatpush1.xpose.msra.mxu0 0.0
        %1540 = vmatprep.subr.mxu0 0.0
        %1541 = vmatpush1.xpose.msra.mxu0 0.0
        %1542 = vmatprep.subr.mxu0 0.0
        %1543 = vmatpush1.xpose.msra.mxu0 0.0
        %1544 = vmatprep.subr.mxu0 0.0
        %1545 = vmatpush1.xpose.msra.mxu0 0.0
        %1546 = vmatprep.subr.mxu0 0.0
        %1547 = vmatpush1.xpose.msra.mxu0 0.0
        %1548 = vmatprep.subr.mxu0 0.0
        %1549 = vmatpush1.xpose.msra.mxu0 0.0
        %1550 = vmatprep.subr.mxu0 0.0
        %1551 = vmatpush1.xpose.msra.mxu0 0.0
        %1552 = vmatprep.subr.mxu0 0.0
        %1553 = vmatpush1.xpose.msra.mxu0 0.0
        %1554 = vmatprep.subr.mxu0 0.0
        %1555 = vmatpush1.xpose.msra.mxu0 0.0
        %1556 = vmatprep.subr.mxu0 0.0
        %1557 = vmatpush1.xpose.msra.mxu0 0.0
        %1558 = vmatprep.subr.mxu0 0.0
        %1559 = vmatpush1.xpose.msra.mxu0 0.0
        %1560 = vmatprep.subr.mxu0 0.0
        %1561 = vmatpush1.xpose.msra.mxu0 0.0
        %1562 = vmatprep.subr.mxu0 0.0
        %1563 = vmatpush1.xpose.msra.mxu0 0.0
        %1564 = vmatprep.subr.mxu0 0.0
        %1565 = vmatpush1.xpose.msra.mxu0 0.0
        %1566 = vmatprep.subr.mxu0 0.0
        %1567 = vmatpush1.xpose.msra.mxu0 0.0
        %1568 = vmatprep.subr.mxu0 0.0
        %1569 = vmatpush1.xpose.msra.mxu0 0.0
        %1570 = vmatprep.subr.mxu0 0.0
        %1571 = vmatpush1.xpose.msra.mxu0 0.0
        %1572 = vmatprep.subr.mxu0 0.0
        %1573 = vmatpush1.xpose.msra.mxu0 0.0
        %1574 = vmatprep.subr.mxu0 0.0
        %1575 = vmatpush1.xpose.msra.mxu0 0.0
        %1576 = vmatprep.mubr.f32.mxu0 0.0
        %1577 = vmatmul.mubr.f32.gmra.mrb[0].mxu0 %v1508
        %v1578 = vpop.f32.mrb[0].mxu0
        %v1579 = vadd.f32 0.0, %v1578
        %v1580 = vpop.f32.mrb[0].mxu0
        %1581 = vdwg.mxu0
        %1582 = vrot.lane.b32.xlu0 %v480, 104
        %v1583 = vpop.permute.xlu0 %1582
        %1584 = vrot.lane.b32.xlu0 %v480, 72
        %v1585 = vpop.permute.xlu0 %1584
        %v1586 = vsel %vm486, %v1583, 0
        %v1588 = vsel %vm486, %v1585, 0
        %1590 = vmatprep.subr.mxu0 0.0
        %1591 = vmatpush1.xpose.msra.mxu0 %v1588
        %1592 = vmatprep.subr.mxu0 0.0
        %1593 = vmatpush1.xpose.msra.mxu0 0.0
        %1594 = vmatprep.subr.mxu0 0.0
        %1595 = vmatpush1.xpose.msra.mxu0 0.0
        %1596 = vmatprep.subr.mxu0 0.0
        %1597 = vmatpush1.xpose.msra.mxu0 0.0
        %1598 = vmatprep.subr.mxu0 0.0
        %1599 = vmatpush1.xpose.msra.mxu0 0.0
        %1600 = vmatprep.subr.mxu0 0.0
        %1601 = vmatpush1.xpose.msra.mxu0 0.0
        %1602 = vmatprep.subr.mxu0 0.0
        %1603 = vmatpush1.xpose.msra.mxu0 0.0
        %1604 = vmatprep.subr.mxu0 0.0
        %1605 = vmatpush1.xpose.msra.mxu0 0.0
        %1606 = vmatprep.subr.mxu0 0.0
        %1607 = vmatpush1.xpose.msra.mxu0 0.0
        %1608 = vmatprep.subr.mxu0 0.0
        %1609 = vmatpush1.xpose.msra.mxu0 0.0
        %1610 = vmatprep.subr.mxu0 0.0
        %1611 = vmatpush1.xpose.msra.mxu0 0.0
        %1612 = vmatprep.subr.mxu0 0.0
        %1613 = vmatpush1.xpose.msra.mxu0 0.0
        %1614 = vmatprep.subr.mxu0 0.0
        %1615 = vmatpush1.xpose.msra.mxu0 0.0
        %1616 = vmatprep.subr.mxu0 0.0
        %1617 = vmatpush1.xpose.msra.mxu0 0.0
        %1618 = vmatprep.subr.mxu0 0.0
        %1619 = vmatpush1.xpose.msra.mxu0 0.0
        %1620 = vmatprep.subr.mxu0 0.0
        %1621 = vmatpush1.xpose.msra.mxu0 0.0
        %1622 = vmatprep.subr.mxu0 0.0
        %1623 = vmatpush1.xpose.msra.mxu0 0.0
        %1624 = vmatprep.subr.mxu0 0.0
        %1625 = vmatpush1.xpose.msra.mxu0 0.0
        %1626 = vmatprep.subr.mxu0 0.0
        %1627 = vmatpush1.xpose.msra.mxu0 0.0
        %1628 = vmatprep.subr.mxu0 0.0
        %1629 = vmatpush1.xpose.msra.mxu0 0.0
        %1630 = vmatprep.subr.mxu0 0.0
        %1631 = vmatpush1.xpose.msra.mxu0 0.0
        %1632 = vmatprep.subr.mxu0 0.0
        %1633 = vmatpush1.xpose.msra.mxu0 0.0
        %1634 = vmatprep.subr.mxu0 0.0
        %1635 = vmatpush1.xpose.msra.mxu0 0.0
        %1636 = vmatprep.subr.mxu0 0.0
        %1637 = vmatpush1.xpose.msra.mxu0 0.0
        %1638 = vmatprep.subr.mxu0 0.0
        %1639 = vmatpush1.xpose.msra.mxu0 0.0
        %1640 = vmatprep.subr.mxu0 0.0
        %1641 = vmatpush1.xpose.msra.mxu0 0.0
        %1642 = vmatprep.subr.mxu0 0.0
        %1643 = vmatpush1.xpose.msra.mxu0 0.0
        %1644 = vmatprep.subr.mxu0 0.0
        %1645 = vmatpush1.xpose.msra.mxu0 0.0
        %1646 = vmatprep.subr.mxu0 0.0
        %1647 = vmatpush1.xpose.msra.mxu0 0.0
        %1648 = vmatprep.subr.mxu0 0.0
        %1649 = vmatpush1.xpose.msra.mxu0 0.0
        %1650 = vmatprep.subr.mxu0 0.0
        %1651 = vmatpush1.xpose.msra.mxu0 0.0
        %1652 = vmatprep.subr.mxu0 0.0
        %1653 = vmatpush1.xpose.msra.mxu0 0.0
        %1654 = vmatprep.mubr.f32.mxu0 0.0
        %1655 = vmatmul.mubr.f32.gmra.mrb[0].mxu0 %v1586
        %v1656 = vpop.f32.mrb[0].mxu0
        %v1657 = vadd.f32 0.0, %v1656
        %v1658 = vpop.f32.mrb[0].mxu0
        %1659 = vdwg.mxu0
        %v1660 = vsel %vm486, %v1579, -inf
        %1661 = vmax.xlane.f32.xlu0 %v1660
        %v1662 = vpop.xlane.xlu0 %1661
        %v1663 = vsel %vm486, %v1657, -inf
        %1664 = vmax.xlane.f32.xlu0 %v1663
        %v1665 = vpop.xlane.xlu0 %1664
        %v1666 = vsub.f32 %v1579, %v1662
        %v1667 = vsub.f32 %v1657, %v1665
        %v1668 = vmul.f32 %v1666, 1.442695
        %v1669 = vpow.pop %v1668
        %v1670 = vmul.f32 %v1667, 1.442695
        %v1671 = vpow.pop %v1670
        %v1672 = vsel %vm486, %v1669, 0.0
        %1673 = vadd.xlane.f32.xlu0 %v1672
        %v1674 = vpop.xlane.xlu0 %1673
        %v1675 = vsel %vm486, %v1671, 0.0
        %1676 = vadd.xlane.f32.xlu0 %v1675
        %v1677 = vpop.xlane.xlu0 %1676
        %v1678 = vrcp.pop %v1674
        %v1679 = vrcp.pop %v1677
        %v1680 = vmul.f32 %v1669, %v1678
        %v1681 = vmul.f32 %v1671, %v1679
        %s1682 = scalar_lea.vmem %s379, 24 [#allocation7]
        %1683 = vst.msk [vmem:[%s1682] sm:$0xff] %vm486, %v1680
        %1684 = vst.msk [vmem:[%s1682 + $0x20] sm:$0xff] %vm486, %v1681
        %1685 = vrot.lane.b32.xlu0 %v475, 40
        %v1686 = vpop.permute.xlu0 %1685
        %v1689 = vsel %vm486, %v1680, 0
        %1691 = vmatprep.subr.mxu0 0.0
        %1692 = vmatpush1.msra.mxu0 %v1686
        %1693 = vmatprep.subr.mxu0 0.0
        %1694 = vmatpush1.msra.mxu0 0.0
        %1695 = vmatprep.subr.mxu0 0.0
        %1696 = vmatpush1.msra.mxu0 0.0
        %1697 = vmatprep.subr.mxu0 0.0
        %1698 = vmatpush1.msra.mxu0 0.0
        %1699 = vmatprep.subr.mxu0 0.0
        %1700 = vmatpush1.msra.mxu0 0.0
        %1701 = vmatprep.subr.mxu0 0.0
        %1702 = vmatpush1.msra.mxu0 0.0
        %1703 = vmatprep.subr.mxu0 0.0
        %1704 = vmatpush1.msra.mxu0 0.0
        %1705 = vmatprep.subr.mxu0 0.0
        %1706 = vmatpush1.msra.mxu0 0.0
        %1707 = vmatprep.subr.mxu0 0.0
        %1708 = vmatpush1.msra.mxu0 0.0
        %1709 = vmatprep.subr.mxu0 0.0
        %1710 = vmatpush1.msra.mxu0 0.0
        %1711 = vmatprep.subr.mxu0 0.0
        %1712 = vmatpush1.msra.mxu0 0.0
        %1713 = vmatprep.subr.mxu0 0.0
        %1714 = vmatpush1.msra.mxu0 0.0
        %1715 = vmatprep.subr.mxu0 0.0
        %1716 = vmatpush1.msra.mxu0 0.0
        %1717 = vmatprep.subr.mxu0 0.0
        %1718 = vmatpush1.msra.mxu0 0.0
        %1719 = vmatprep.subr.mxu0 0.0
        %1720 = vmatpush1.msra.mxu0 0.0
        %1721 = vmatprep.subr.mxu0 0.0
        %1722 = vmatpush1.msra.mxu0 0.0
        %1723 = vmatprep.subr.mxu0 0.0
        %1724 = vmatpush1.msra.mxu0 0.0
        %1725 = vmatprep.subr.mxu0 0.0
        %1726 = vmatpush1.msra.mxu0 0.0
        %1727 = vmatprep.subr.mxu0 0.0
        %1728 = vmatpush1.msra.mxu0 0.0
        %1729 = vmatprep.subr.mxu0 0.0
        %1730 = vmatpush1.msra.mxu0 0.0
        %1731 = vmatprep.subr.mxu0 0.0
        %1732 = vmatpush1.msra.mxu0 0.0
        %1733 = vmatprep.subr.mxu0 0.0
        %1734 = vmatpush1.msra.mxu0 0.0
        %1735 = vmatprep.subr.mxu0 0.0
        %1736 = vmatpush1.msra.mxu0 0.0
        %1737 = vmatprep.subr.mxu0 0.0
        %1738 = vmatpush1.msra.mxu0 0.0
        %1739 = vmatprep.subr.mxu0 0.0
        %1740 = vmatpush1.msra.mxu0 0.0
        %1741 = vmatprep.subr.mxu0 0.0
        %1742 = vmatpush1.msra.mxu0 0.0
        %1743 = vmatprep.subr.mxu0 0.0
        %1744 = vmatpush1.msra.mxu0 0.0
        %1745 = vmatprep.subr.mxu0 0.0
        %1746 = vmatpush1.msra.mxu0 0.0
        %1747 = vmatprep.subr.mxu0 0.0
        %1748 = vmatpush1.msra.mxu0 0.0
        %1749 = vmatprep.subr.mxu0 0.0
        %1750 = vmatpush1.msra.mxu0 0.0
        %1751 = vmatprep.subr.mxu0 0.0
        %1752 = vmatpush1.msra.mxu0 0.0
        %1753 = vmatprep.subr.mxu0 0.0
        %1754 = vmatpush1.msra.mxu0 0.0
        %1755 = vmatprep.mubr.f32.mxu0 0.0
        %1756 = vmatmul.mubr.f32.gmra.mrb[0].mxu0 %v1689
        %v1757 = vpop.f32.mrb[0].mxu0
        %v1758 = vadd.f32 0.0, %v1757
        %v1759 = vpop.f32.mrb[0].mxu0
        %1760 = vdwg.mxu0
        %1761 = vrot.lane.b32.xlu0 %v480, 40
        %v1762 = vpop.permute.xlu0 %1761
        %v1765 = vsel %vm486, %v1681, 0
        %1767 = vmatprep.subr.mxu0 0.0
        %1768 = vmatpush1.msra.mxu0 %v1762
        %1769 = vmatprep.subr.mxu0 0.0
        %1770 = vmatpush1.msra.mxu0 0.0
        %1771 = vmatprep.subr.mxu0 0.0
        %1772 = vmatpush1.msra.mxu0 0.0
        %1773 = vmatprep.subr.mxu0 0.0
        %1774 = vmatpush1.msra.mxu0 0.0
        %1775 = vmatprep.subr.mxu0 0.0
        %1776 = vmatpush1.msra.mxu0 0.0
        %1777 = vmatprep.subr.mxu0 0.0
        %1778 = vmatpush1.msra.mxu0 0.0
        %1779 = vmatprep.subr.mxu0 0.0
        %1780 = vmatpush1.msra.mxu0 0.0
        %1781 = vmatprep.subr.mxu0 0.0
        %1782 = vmatpush1.msra.mxu0 0.0
        %1783 = vmatprep.subr.mxu0 0.0
        %1784 = vmatpush1.msra.mxu0 0.0
        %1785 = vmatprep.subr.mxu0 0.0
        %1786 = vmatpush1.msra.mxu0 0.0
        %1787 = vmatprep.subr.mxu0 0.0
        %1788 = vmatpush1.msra.mxu0 0.0
        %1789 = vmatprep.subr.mxu0 0.0
        %1790 = vmatpush1.msra.mxu0 0.0
        %1791 = vmatprep.subr.mxu0 0.0
        %1792 = vmatpush1.msra.mxu0 0.0
        %1793 = vmatprep.subr.mxu0 0.0
        %1794 = vmatpush1.msra.mxu0 0.0
        %1795 = vmatprep.subr.mxu0 0.0
        %1796 = vmatpush1.msra.mxu0 0.0
        %1797 = vmatprep.subr.mxu0 0.0
        %1798 = vmatpush1.msra.mxu0 0.0
        %1799 = vmatprep.subr.mxu0 0.0
        %1800 = vmatpush1.msra.mxu0 0.0
        %1801 = vmatprep.subr.mxu0 0.0
        %1802 = vmatpush1.msra.mxu0 0.0
        %1803 = vmatprep.subr.mxu0 0.0
        %1804 = vmatpush1.msra.mxu0 0.0
        %1805 = vmatprep.subr.mxu0 0.0
        %1806 = vmatpush1.msra.mxu0 0.0
        %1807 = vmatprep.subr.mxu0 0.0
        %1808 = vmatpush1.msra.mxu0 0.0
        %1809 = vmatprep.subr.mxu0 0.0
        %1810 = vmatpush1.msra.mxu0 0.0
        %1811 = vmatprep.subr.mxu0 0.0
        %1812 = vmatpush1.msra.mxu0 0.0
        %1813 = vmatprep.subr.mxu0 0.0
        %1814 = vmatpush1.msra.mxu0 0.0
        %1815 = vmatprep.subr.mxu0 0.0
        %1816 = vmatpush1.msra.mxu0 0.0
        %1817 = vmatprep.subr.mxu0 0.0
        %1818 = vmatpush1.msra.mxu0 0.0
        %1819 = vmatprep.subr.mxu0 0.0
        %1820 = vmatpush1.msra.mxu0 0.0
        %1821 = vmatprep.subr.mxu0 0.0
        %1822 = vmatpush1.msra.mxu0 0.0
        %1823 = vmatprep.subr.mxu0 0.0
        %1824 = vmatpush1.msra.mxu0 0.0
        %1825 = vmatprep.subr.mxu0 0.0
        %1826 = vmatpush1.msra.mxu0 0.0
        %1827 = vmatprep.subr.mxu0 0.0
        %1828 = vmatpush1.msra.mxu0 0.0
        %1829 = vmatprep.subr.mxu0 0.0
        %1830 = vmatpush1.msra.mxu0 0.0
        %1831 = vmatprep.mubr.f32.mxu0 0.0
        %1832 = vmatmul.mubr.f32.gmra.mrb[0].mxu0 %v1765
        %v1833 = vpop.f32.mrb[0].mxu0
        %v1834 = vadd.f32 0.0, %v1833
        %v1835 = vpop.f32.mrb[0].mxu0
        %1836 = vdwg.mxu0
        %1839 = vrot.lane.b32.xlu0 %v1758, 24
        %v1840 = vpop.permute.xlu0 %1839
        %1841 = vrot.lane.b32.xlu0 %v1834, 24
        %v1842 = vpop.permute.xlu0 %1841
        %vm1845 = vcmask 261312
        %1846 = vst.msk [vmem:[#allocation2] sm:$0xff] %vm1845, %v1840
        %1847 = vst.msk [vmem:[#allocation2 + $0x8] sm:$0xff] %vm1845, %v1842
        %v1848 = vld [vmem:[#allocation2] sm:$0xff]
        %v1849 = vld [vmem:[#allocation2 + $0x8] sm:$0xff]
        %v1850 = vld [vmem:[%s3] sm:$0xff]
        %v1851 = vld [vmem:[%s3 + $0x8] sm:$0xff]
        %v1852 = vld [vmem:[%s3 + $0x10] sm:$0xff]
        %v1853 = vld [vmem:[%s3 + $0x18] sm:$0xff]
        %v1854 = vld [vmem:[%s4] sm:$0x1]
        %v1856 = vlaneseq
        %v1857 = vshrl.u32 %v1856, 7
        %v1858 = vsub.s32 0, %v1857
        %v1859 = vrot.slane %v1854, %v1858
        %v1862 = vsel %vm401, %v1848, 0
        %v1865 = vsel %vm401, %v1849, 0
        %1867 = vmatprep.subr.mxu0 0.0
        %1868 = vmatpush1.msra.mxu0 %v1850
        %1869 = vmatprep.subr.mxu0 0.0
        %1870 = vmatpush1.msra.mxu0 %v1851
        %1871 = vmatprep.subr.mxu0 0.0
        %1872 = vmatpush1.msra.mxu0 %v1852
        %1873 = vmatprep.subr.mxu0 0.0
        %1874 = vmatpush1.msra.mxu0 %v1853
        %1875 = vmatprep.subr.mxu0 0.0
        %1876 = vmatpush1.msra.mxu0 0.0
        %1877 = vmatprep.subr.mxu0 0.0
        %1878 = vmatpush1.msra.mxu0 0.0
        %1879 = vmatprep.subr.mxu0 0.0
        %1880 = vmatpush1.msra.mxu0 0.0
        %1881 = vmatprep.subr.mxu0 0.0
        %1882 = vmatpush1.msra.mxu0 0.0
        %1883 = vmatprep.subr.mxu0 0.0
        %1884 = vmatpush1.msra.mxu0 0.0
        %1885 = vmatprep.subr.mxu0 0.0
        %1886 = vmatpush1.msra.mxu0 0.0
        %1887 = vmatprep.subr.mxu0 0.0
        %1888 = vmatpush1.msra.mxu0 0.0
        %1889 = vmatprep.subr.mxu0 0.0
        %1890 = vmatpush1.msra.mxu0 0.0
        %1891 = vmatprep.subr.mxu0 0.0
        %1892 = vmatpush1.msra.mxu0 0.0
        %1893 = vmatprep.subr.mxu0 0.0
        %1894 = vmatpush1.msra.mxu0 0.0
        %1895 = vmatprep.subr.mxu0 0.0
        %1896 = vmatpush1.msra.mxu0 0.0
        %1897 = vmatprep.subr.mxu0 0.0
        %1898 = vmatpush1.msra.mxu0 0.0
        %1899 = vmatprep.subr.mxu0 0.0
        %1900 = vmatpush1.msra.mxu0 0.0
        %1901 = vmatprep.subr.mxu0 0.0
        %1902 = vmatpush1.msra.mxu0 0.0
        %1903 = vmatprep.subr.mxu0 0.0
        %1904 = vmatpush1.msra.mxu0 0.0
        %1905 = vmatprep.subr.mxu0 0.0
        %1906 = vmatpush1.msra.mxu0 0.0
        %1907 = vmatprep.subr.mxu0 0.0
        %1908 = vmatpush1.msra.mxu0 0.0
        %1909 = vmatprep.subr.mxu0 0.0
        %1910 = vmatpush1.msra.mxu0 0.0
        %1911 = vmatprep.subr.mxu0 0.0
        %1912 = vmatpush1.msra.mxu0 0.0
        %1913 = vmatprep.subr.mxu0 0.0
        %1914 = vmatpush1.msra.mxu0 0.0
        %1915 = vmatprep.subr.mxu0 0.0
        %1916 = vmatpush1.msra.mxu0 0.0
        %1917 = vmatprep.subr.mxu0 0.0
        %1918 = vmatpush1.msra.mxu0 0.0
        %1919 = vmatprep.subr.mxu0 0.0
        %1920 = vmatpush1.msra.mxu0 0.0
        %1921 = vmatprep.subr.mxu0 0.0
        %1922 = vmatpush1.msra.mxu0 0.0
        %1923 = vmatprep.subr.mxu0 0.0
        %1924 = vmatpush1.msra.mxu0 0.0
        %1925 = vmatprep.subr.mxu0 0.0
        %1926 = vmatpush1.msra.mxu0 0.0
        %1927 = vmatprep.subr.mxu0 0.0
        %1928 = vmatpush1.msra.mxu0 0.0
        %1929 = vmatprep.subr.mxu0 0.0
        %1930 = vmatpush1.msra.mxu0 0.0
        %1931 = vmatprep.mubr.f32.mxu0 0.0
        %1932 = vmatmul.mubr.f32.gmra.mrb[0].mxu0 %v1862
        %v1933 = vpop.f32.mrb[0].mxu0
        %v1934 = vadd.f32 %v1859, %v1933
        %v1935 = vpop.f32.mrb[0].mxu0
        %1936 = vmatprep.mubr.f32.mxu0 0.0
        %1937 = vmatmul.mubr.f32.gmra.mrb[0].mxu0 %v1865
        %v1938 = vpop.f32.mrb[0].mxu0
        %v1939 = vadd.f32 %v1859, %v1938
        %v1940 = vpop.f32.mrb[0].mxu0
        %1941 = vdwg.mxu0
        %v1942 = vadd.f32 %v388, %v1934
        %v1943 = vadd.f32 %v389, %v1939
        %v1944 = vsel %vm401, %v1942, 0.0
        %1945 = vadd.xlane.f32.xlu0 %v1944
        %v1946 = vpop.xlane.xlu0 %1945
        %v1947 = vsel %vm401, %v1943, 0.0
        %1948 = vadd.xlane.f32.xlu0 %v1947
        %v1949 = vpop.xlane.xlu0 %1948
        %v1950 = vrcp.pop 32.0
        %v1951 = vmul.f32 %v1946, %v1950
        %v1952 = vmul.f32 %v1949, %v1950
        %v1953 = vsub.f32 %v1942, %v1951
        %v1954 = vsub.f32 %v1943, %v1952
        %v1955 = vmul.f32 %v1953, %v1953
        %v1956 = vmul.f32 %v1954, %v1954
        %v1957 = vsel %vm401, %v1955, 0.0
        %1958 = vadd.xlane.f32.xlu0 %v1957
        %v1959 = vpop.xlane.xlu0 %1958
        %v1960 = vsel %vm401, %v1956, 0.0
        %1961 = vadd.xlane.f32.xlu0 %v1960
        %v1962 = vpop.xlane.xlu0 %1961
        %v1963 = vmul.f32 %v1959, %v1950
        %v1964 = vmul.f32 %v1962, %v1950
        %v1965 = vadd.f32 %v1963, 1e-05
        %v1966 = vadd.f32 %v1964, 1e-05
        %v1967 = vrsqrt.pop %v1965
        %v1968 = vrsqrt.pop %v1966
        %v1969 = vmul.f32 %v1953, %v1967
        %v1970 = vmul.f32 %v1954, %v1968
        %v1971 = vld [vmem:[#allocation3] sm:$0xff]
        %v1972 = vld [vmem:[#allocation3 + $0x8] sm:$0xff]
        %v1973 = vld [vmem:[#allocation3 + $0x10] sm:$0xff]
        %v1974 = vld [vmem:[#allocation3 + $0x18] sm:$0xff]
        %v1975 = vld [vmem:[%s6] sm:$0x1]
        %v1977 = vlaneseq
        %v1978 = vshrl.u32 %v1977, 7
        %v1979 = vsub.s32 0, %v1978
        %v1980 = vrot.slane %v1975, %v1979
        %v1983 = vsel %vm401, %v1969, 0
        %v1986 = vsel %vm401, %v1970, 0
        %1988 = vmatprep.subr.mxu0 0.0
        %1989 = vmatpush1.msra.mxu0 %v1971
        %1990 = vmatprep.subr.mxu0 0.0
        %1991 = vmatpush1.msra.mxu0 %v1972
        %1992 = vmatprep.subr.mxu0 0.0
        %1993 = vmatpush1.msra.mxu0 %v1973
        %1994 = vmatprep.subr.mxu0 0.0
        %1995 = vmatpush1.msra.mxu0 %v1974
        %1996 = vmatprep.subr.mxu0 0.0
        %1997 = vmatpush1.msra.mxu0 0.0
        %1998 = vmatprep.subr.mxu0 0.0
        %1999 = vmatpush1.msra.mxu0 0.0
        %2000 = vmatprep.subr.mxu0 0.0
        %2001 = vmatpush1.msra.mxu0 0.0
        %2002 = vmatprep.subr.mxu0 0.0
        %2003 = vmatpush1.msra.mxu0 0.0
        %2004 = vmatprep.subr.mxu0 0.0
        %2005 = vmatpush1.msra.mxu0 0.0
        %2006 = vmatprep.subr.mxu0 0.0
        %2007 = vmatpush1.msra.mxu0 0.0
        %2008 = vmatprep.subr.mxu0 0.0
        %2009 = vmatpush1.msra.mxu0 0.0
        %2010 = vmatprep.subr.mxu0 0.0
        %2011 = vmatpush1.msra.mxu0 0.0
        %2012 = vmatprep.subr.mxu0 0.0
        %2013 = vmatpush1.msra.mxu0 0.0
        %2014 = vmatprep.subr.mxu0 0.0
        %2015 = vmatpush1.msra.mxu0 0.0
        %2016 = vmatprep.subr.mxu0 0.0
        %2017 = vmatpush1.msra.mxu0 0.0
        %2018 = vmatprep.subr.mxu0 0.0
        %2019 = vmatpush1.msra.mxu0 0.0
        %2020 = vmatprep.subr.mxu0 0.0
        %2021 = vmatpush1.msra.mxu0 0.0
        %2022 = vmatprep.subr.mxu0 0.0
        %2023 = vmatpush1.msra.mxu0 0.0
        %2024 = vmatprep.subr.mxu0 0.0
        %2025 = vmatpush1.msra.mxu0 0.0
        %2026 = vmatprep.subr.mxu0 0.0
        %2027 = vmatpush1.msra.mxu0 0.0
        %2028 = vmatprep.subr.mxu0 0.0
        %2029 = vmatpush1.msra.mxu0 0.0
        %2030 = vmatprep.subr.mxu0 0.0
        %2031 = vmatpush1.msra.mxu0 0.0
        %2032 = vmatprep.subr.mxu0 0.0
        %2033 = vmatpush1.msra.mxu0 0.0
        %2034 = vmatprep.subr.mxu0 0.0
        %2035 = vmatpush1.msra.mxu0 0.0
        %2036 = vmatprep.subr.mxu0 0.0
        %2037 = vmatpush1.msra.mxu0 0.0
        %2038 = vmatprep.subr.mxu0 0.0
        %2039 = vmatpush1.msra.mxu0 0.0
        %2040 = vmatprep.subr.mxu0 0.0
        %2041 = vmatpush1.msra.mxu0 0.0
        %2042 = vmatprep.subr.mxu0 0.0
        %2043 = vmatpush1.msra.mxu0 0.0
        %2044 = vmatprep.subr.mxu0 0.0
        %2045 = vmatpush1.msra.mxu0 0.0
        %2046 = vmatprep.subr.mxu0 0.0
        %2047 = vmatpush1.msra.mxu0 0.0
        %2048 = vmatprep.subr.mxu0 0.0
        %2049 = vmatpush1.msra.mxu0 0.0
        %2050 = vmatprep.subr.mxu0 0.0
        %2051 = vmatpush1.msra.mxu0 0.0
        %2052 = vmatprep.mubr.f32.mxu0 0.0
        %2053 = vmatmul.mubr.f32.gmra.mrb[0].mxu0 %v1983
        %v2054 = vpop.f32.mrb[0].mxu0
        %v2055 = vadd.f32 %v1980, %v2054
        %v2056 = vpop.f32.mrb[0].mxu0
        %2057 = vmatprep.mubr.f32.mxu0 0.0
        %2058 = vmatmul.mubr.f32.gmra.mrb[0].mxu0 %v1986
        %v2059 = vpop.f32.mrb[0].mxu0
        %v2060 = vadd.f32 %v1980, %v2059
        %v2061 = vpop.f32.mrb[0].mxu0
        %2062 = vdwg.mxu0
        %v2063 = vmax.f32 %v2055, 0.0
        %v2064 = vmax.f32 %v2060, 0.0
        %v2065 = vld [vmem:[%s7] sm:$0xff]
        %v2066 = vld [vmem:[%s7 + $0x8] sm:$0xff]
        %v2067 = vld [vmem:[%s7 + $0x10] sm:$0xff]
        %v2068 = vld [vmem:[%s7 + $0x18] sm:$0xff]
        %v2069 = vld [vmem:[%s7 + $0x20] sm:$0xff]
        %v2070 = vld [vmem:[%s7 + $0x28] sm:$0xff]
        %v2071 = vld [vmem:[%s7 + $0x30] sm:$0xff]
        %v2072 = vld [vmem:[%s7 + $0x38] sm:$0xff]
        %v2073 = vld [vmem:[%s8] sm:$0x1]
        %v2075 = vlaneseq
        %v2076 = vshrl.u32 %v2075, 7
        %v2077 = vsub.s32 0, %v2076
        %v2078 = vrot.slane %v2073, %v2077
        %vm2080 = vcmask 523264
        %v2082 = vsel %vm2080, %v2063, 0
        %v2085 = vsel %vm2080, %v2064, 0
        %2087 = vmatprep.subr.mxu0 0.0
        %2088 = vmatpush1.msra.mxu0 %v2065
        %2089 = vmatprep.subr.mxu0 0.0
        %2090 = vmatpush1.msra.mxu0 %v2066
        %2091 = vmatprep.subr.mxu0 0.0
        %2092 = vmatpush1.msra.mxu0 %v2067
        %2093 = vmatprep.subr.mxu0 0.0
        %2094 = vmatpush1.msra.mxu0 %v2068
        %2095 = vmatprep.subr.mxu0 0.0
        %2096 = vmatpush1.msra.mxu0 %v2069
        %2097 = vmatprep.subr.mxu0 0.0
        %2098 = vmatpush1.msra.mxu0 %v2070
        %2099 = vmatprep.subr.mxu0 0.0
        %2100 = vmatpush1.msra.mxu0 %v2071
        %2101 = vmatprep.subr.mxu0 0.0
        %2102 = vmatpush1.msra.mxu0 %v2072
        %2103 = vmatprep.subr.mxu0 0.0
        %2104 = vmatpush1.msra.mxu0 0.0
        %2105 = vmatprep.subr.mxu0 0.0
        %2106 = vmatpush1.msra.mxu0 0.0
        %2107 = vmatprep.subr.mxu0 0.0
        %2108 = vmatpush1.msra.mxu0 0.0
        %2109 = vmatprep.subr.mxu0 0.0
        %2110 = vmatpush1.msra.mxu0 0.0
        %2111 = vmatprep.subr.mxu0 0.0
        %2112 = vmatpush1.msra.mxu0 0.0
        %2113 = vmatprep.subr.mxu0 0.0
        %2114 = vmatpush1.msra.mxu0 0.0
        %2115 = vmatprep.subr.mxu0 0.0
        %2116 = vmatpush1.msra.mxu0 0.0
        %2117 = vmatprep.subr.mxu0 0.0
        %2118 = vmatpush1.msra.mxu0 0.0
        %2119 = vmatprep.subr.mxu0 0.0
        %2120 = vmatpush1.msra.mxu0 0.0
        %2121 = vmatprep.subr.mxu0 0.0
        %2122 = vmatpush1.msra.mxu0 0.0
        %2123 = vmatprep.subr.mxu0 0.0
        %2124 = vmatpush1.msra.mxu0 0.0
        %2125 = vmatprep.subr.mxu0 0.0
        %2126 = vmatpush1.msra.mxu0 0.0
        %2127 = vmatprep.subr.mxu0 0.0
        %2128 = vmatpush1.msra.mxu0 0.0
        %2129 = vmatprep.subr.mxu0 0.0
        %2130 = vmatpush1.msra.mxu0 0.0
        %2131 = vmatprep.subr.mxu0 0.0
        %2132 = vmatpush1.msra.mxu0 0.0
        %2133 = vmatprep.subr.mxu0 0.0
        %2134 = vmatpush1.msra.mxu0 0.0
        %2135 = vmatprep.subr.mxu0 0.0
        %2136 = vmatpush1.msra.mxu0 0.0
        %2137 = vmatprep.subr.mxu0 0.0
        %2138 = vmatpush1.msra.mxu0 0.0
        %2139 = vmatprep.subr.mxu0 0.0
        %2140 = vmatpush1.msra.mxu0 0.0
        %2141 = vmatprep.subr.mxu0 0.0
        %2142 = vmatpush1.msra.mxu0 0.0
        %2143 = vmatprep.subr.mxu0 0.0
        %2144 = vmatpush1.msra.mxu0 0.0
        %2145 = vmatprep.subr.mxu0 0.0
        %2146 = vmatpush1.msra.mxu0 0.0
        %2147 = vmatprep.subr.mxu0 0.0
        %2148 = vmatpush1.msra.mxu0 0.0
        %2149 = vmatprep.subr.mxu0 0.0
        %2150 = vmatpush1.msra.mxu0 0.0
        %2151 = vmatprep.mubr.f32.mxu0 0.0
        %2152 = vmatmul.mubr.f32.gmra.mrb[0].mxu0 %v2082
        %v2153 = vpop.f32.mrb[0].mxu0
        %v2154 = vadd.f32 %v2078, %v2153
        %v2155 = vpop.f32.mrb[0].mxu0
        %2156 = vmatprep.mubr.f32.mxu0 0.0
        %2157 = vmatmul.mubr.f32.gmra.mrb[0].mxu0 %v2085
        %v2158 = vpop.f32.mrb[0].mxu0
        %v2159 = vadd.f32 %v2078, %v2158
        %v2160 = vpop.f32.mrb[0].mxu0
        %2161 = vdwg.mxu0
        %v2162 = vadd.f32 %v1969, %v2154
        %v2163 = vadd.f32 %v1970, %v2159
        %v2164 = vsel %vm401, %v2162, 0.0
        %2165 = vadd.xlane.f32.xlu0 %v2164
        %v2166 = vpop.xlane.xlu0 %2165
        %v2167 = vsel %vm401, %v2163, 0.0
        %2168 = vadd.xlane.f32.xlu0 %v2167
        %v2169 = vpop.xlane.xlu0 %2168
        %v2170 = vmul.f32 %v2166, %v1950
        %v2171 = vmul.f32 %v2169, %v1950
        %v2172 = vsub.f32 %v2162, %v2170
        %v2173 = vsub.f32 %v2163, %v2171
        %v2174 = vmul.f32 %v2172, %v2172
        %v2175 = vmul.f32 %v2173, %v2173
        %v2176 = vsel %vm401, %v2174, 0.0
        %2177 = vadd.xlane.f32.xlu0 %v2176
        %v2178 = vpop.xlane.xlu0 %2177
        %v2179 = vsel %vm401, %v2175, 0.0
        %2180 = vadd.xlane.f32.xlu0 %v2179
        %v2181 = vpop.xlane.xlu0 %2180
        %v2182 = vmul.f32 %v2178, %v1950
        %v2183 = vmul.f32 %v2181, %v1950
        %v2184 = vadd.f32 %v2182, 1e-05
        %v2185 = vadd.f32 %v2183, 1e-05
        %v2186 = vrsqrt.pop %v2184
        %v2187 = vrsqrt.pop %v2185
        %v2188 = vmul.f32 %v2172, %v2186
        %v2189 = vmul.f32 %v2173, %v2187
        %2190 = vst.msk [vmem:[%s372] sm:$0xff] %vm401, %v2188
        %2191 = vst.msk [vmem:[%s372 + $0x8] sm:$0xff] %vm401, %v2189
        %s2192 = sand.u32 %s231, 1
        %s2193 = scalar_lea.sflag [#allocation5], %s2192
        %s2194 = sand.u32 %s231, 1
        %s2195 = smul.addr %s2194, 16
        %s2196 = scalar_lea.vmem [#allocation6], %s2195
        %s2197 = sand.u32 %s257, 1
        %s2198 = scalar_lea.sflag [#allocation8], %s2197
        %s2199 = sand.u32 %s257, 1
        %s2200 = smul.addr %s2199, 64
        %s2201 = scalar_lea.vmem [#allocation7], %s2200
        // Predicated region
        $region61: #{tpu_custom_call.1} parent=55 // pred_check
          %p2202 = pneg %p241
        $region62: #{tpu_custom_call.1} parent=55 // pred_check_branch
          %2204 = sbr.rel (%p2202) target = $region64
        $region63: #{tpu_custom_call.1} parent=55 // pred_region
          %s2205 = smul.u32 2, %s29
          %s2207 = ssub.s32 256, 256
          %2208 = vsyncadd %s2193, %s2207
          %s2209 = smul.addr %s2205, 128
          %s2210 = scalar_lea.hbm %s9, %s2209
          %s2211 = sshll.u32 %s2196, 4
          %s2212 = int_to_ptr.vmem [resolvable:$true] %s2211
          %2217 = dma.vmem_to_hbm [thread:$0]  %s2212, 256, %s2210, %s2193, 128, 128, 8
        $region64: #{tpu_custom_call.1} parent=55 // pred_fallthru
          _
        // Predicated region
        $region65: #{tpu_custom_call.1} parent=55 // pred_check
          %p2218 = pneg %p267
        $region66: #{tpu_custom_call.1} parent=55 // pred_check_branch
          %2220 = sbr.rel (%p2218) target = $region68
        $region67: #{tpu_custom_call.1} parent=55 // pred_region
          %s2221 = smul.u32 2, %s29
          %s2223 = ssub.s32 1024, 1024
          %2224 = vsyncadd %s2198, %s2223
          %s2225 = smul.addr %s2221, 4
          %s2226 = smul.addr %s2225, 128
          %s2227 = scalar_lea.hbm %s10, %s2226
          %s2228 = sshll.u32 %s2201, 4
          %s2229 = int_to_ptr.vmem [resolvable:$true] %s2228
          %2234 = dma.vmem_to_hbm [thread:$0]  %s2229, 1024, %s2227, %s2198, 128, 128, 8
        $region68: #{tpu_custom_call.1} parent=55 // pred_fallthru
          _
      $region56: #{tpu_custom_call.1} parent=5 // pred_fallthru
        _
      %p2235 = scmp.le.s32.totalorder 2, %s24
      // Predicated region
      $region69: #{tpu_custom_call.1} parent=5 // pred_check
        %p2236 = pneg %p2235
      $region70: #{tpu_custom_call.1} parent=5 // pred_check_branch
        %2238 = sbr.rel (%p2236) target = $region72
      $region71: #{tpu_custom_call.1} parent=5 // pred_region
        %s2239 = ssub.s32 %s24, 2
        // Predicated region
        $region73: #{tpu_custom_call.1} parent=71 // pred_check
          %p2240 = pneg %p247
        $region74: #{tpu_custom_call.1} parent=71 // pred_check_branch
          %2242 = sbr.rel (%p2240) target = $region76
        $region75: #{tpu_custom_call.1} parent=71 // pred_region
          %s2243 = sand.u32 %s232, 1
          %s2244 = scalar_lea.sflag [#allocation5], %s2243
          %s2245 = sand.u32 %s232, 1
          %s2246 = smul.addr %s2245, 16
          %s2247 = scalar_lea.vmem [#allocation6], %s2246
          %2248 = dma.done %s2244, 256
        $region76: #{tpu_custom_call.1} parent=71 // pred_fallthru
          _
        // Predicated region
        $region77: #{tpu_custom_call.1} parent=71 // pred_check
          %p2249 = pneg %p273
        $region78: #{tpu_custom_call.1} parent=71 // pred_check_branch
          %2251 = sbr.rel (%p2249) target = $region80
        $region79: #{tpu_custom_call.1} parent=71 // pred_region
          %s2252 = sand.u32 %s258, 1
          %s2253 = scalar_lea.sflag [#allocation8], %s2252
          %s2254 = sand.u32 %s258, 1
          %s2255 = smul.addr %s2254, 64
          %s2256 = scalar_lea.vmem [#allocation7], %s2255
          %2257 = dma.done %s2253, 1024
        $region80: #{tpu_custom_call.1} parent=71 // pred_fallthru
          _
      $region72: #{tpu_custom_call.1} parent=5 // pred_fallthru
        _
    $region6: #{tpu_custom_call.1} parent=1 // loop_footer
      %s28 = sadd.s32 1, %s24
    $region7: #{tpu_custom_call.1} parent=1 // loop_footer_branch
      %23 = sbr.rel target = $region3
    $region8: #{tpu_custom_call.1} parent=1 // loop_exit
      _
    %2258 = vsyncpa [#allocation4], 1
    %s2259 = scalar_lea.sflag [#allocation4], 1
    %2260 = vsyncpa %s2259, 1
    %2261 = vsyncpa [#allocation5], 1
    %s2262 = scalar_lea.sflag [#allocation5], 1
    %2263 = vsyncpa %s2262, 1
    %2264 = vsyncpa [#allocation8], 1
    %s2265 = scalar_lea.sflag [#allocation8], 1
    %2266 = vsyncpa %s2265, 1

</llo_original>
